<compile_context>
chip_gen: v6e
topology: v6e:2x2x1
jax: 0.10.0
libtpu: 0.0.40
codegen_flags: <defaults>
</compile_context>

<pallas_src>
import jax
import jax.numpy as jnp
from jax.experimental import pallas as pl
from jax.experimental.pallas import tpu as pltpu

P_DIM = 1024   # point-cloud feature width
T_DIM = 6      # grasp/transform width
HID = 512


def _softplus(x):
    # PyTorch F.softplus(beta=1, threshold=20): x if x > 20 else log1p(exp(x))
    return jnp.where(x > 20.0, x, jnp.log1p(jnp.exp(jnp.minimum(x, 20.0))))


def gdf_kernel(p_ref, t_ref, w12p_ref, w12t_ref, b12_ref,
               w3_ref, b3_ref, w4_ref, b4_ref, o_ref):
    cdt = w12p_ref.dtype                       # MXU operand dtype (bf16 or f32)

    p = p_ref[...].astype(cdt)                 # (tb, 1024)
    t = t_ref[...].astype(cdt)                 # (tb, 6)

    # Fused lin1+lin2 (mathematically exact: no activation between them),
    # split contraction (K=1024 MXU-aligned + tiny K=6 term), then relu.
    h = (jnp.dot(p, w12p_ref[...], preferred_element_type=jnp.float32)
         + jnp.dot(t, w12t_ref[...], preferred_element_type=jnp.float32)
         + b12_ref[...])
    h = jnp.maximum(h, 0.0)

    # lin3 + relu
    h = jnp.dot(h.astype(cdt), w3_ref[...],
                preferred_element_type=jnp.float32) + b3_ref[...]
    h = jnp.maximum(h, 0.0)

    # lin4 (512 -> 1): VPU mul + cross-lane reduce instead of an N=1 matmul.
    z = jnp.sum(h * w4_ref[...], axis=-1, keepdims=True) + b4_ref[...]
    o_ref[...] = _softplus(z).astype(o_ref.dtype)


def prepare_params(params, *, dtype=jnp.bfloat16):
    """nn.Linear-style params -> fused kernel layout.

    params = (w1 [1030,512], b1 [1,512], w2 [512,512], b2 [1,512],
              w3 [512,512], b3 [1,512], w4 [512,1], b4 [1,1]),
    weights stored as [in, out] for x @ W.

    lin1/lin2 are fused in f32 BEFORE any dtype cast (exact algebra).  `dtype`
    (bf16 default) applies to the large weight matrices only; biases and the
    final w4 row stay f32.
    """
    w1, b1, w2, b2, w3, b3, w4, b4 = params
    w1f = w1.astype(jnp.float32)
    w2f = w2.astype(jnp.float32)
    w12 = w1f @ w2f                                     # [1030, 512] fused
    b12 = b1.astype(jnp.float32) @ w2f + b2.astype(jnp.float32)
    return (
        w12[:P_DIM].astype(dtype),                      # w12p [1024, 512]
        w12[P_DIM:].astype(dtype),                      # w12t [6, 512]
        b12.astype(jnp.float32),                        # [1, 512]
        w3.astype(dtype), b3.astype(jnp.float32),       # [512,512], [1,512]
        w4.reshape(1, HID).astype(jnp.float32),         # w4 row [1, 512]
        b4.reshape(1, 1).astype(jnp.float32),           # [1, 1]
    )


def _round_up(x, m):
    return ((x + m - 1) // m) * m


def grasp_dist_field_dec(P, T, kernel_params, *, tb=None):
    """P: [B, 1024] f32, T: [B, 6] f32 -> [B, 1] f32."""
    B = P.shape[0]
    if tb is None:
        if B < 256:
            tb = B                              # single grid step, no padding
        else:
            # >= 2 grid steps so "parallel" can shard across both v7x TCs;
            # cap at 1024 rows (per-step pipeline overhead amortization).
            tb = min(1024, _round_up(pl.cdiv(B, 2), 128))
    else:
        tb = min(tb, B)
        if tb < B:
            assert tb % 8 == 0, "batch tile must be a multiple of 8 (use 128/256/512/1024)"
    Bp = _round_up(B, tb)
    if Bp != B:
        P = jnp.pad(P, ((0, Bp - B), (0, 0)))
        T = jnp.pad(T, ((0, Bp - B), (0, 0)))

    # Grid-invariant operands: single-buffered, resident in VMEM for the whole grid.
    def resident(shape):
        return pl.BlockSpec(shape, lambda i: (0, 0), pipeline_mode=pl.Buffered(1))

    out = pl.pallas_call(
        gdf_kernel,
        out_shape=jax.ShapeDtypeStruct((Bp, 1), jnp.float32),
        grid_spec=pltpu.PrefetchScalarGridSpec(
            num_scalar_prefetch=0,
            grid=(Bp // tb,),
            in_specs=[
                pl.BlockSpec((tb, P_DIM), lambda i: (i, 0)),   # P tile (streamed)
                pl.BlockSpec((tb, T_DIM), lambda i: (i, 0)),   # T tile (streamed)
                resident((P_DIM, HID)),                        # w12p (fused lin1@lin2)
                resident((T_DIM, HID)),                        # w12t
                resident((1, HID)),                            # b12
                resident((HID, HID)),                          # w3
                resident((1, HID)),                            # b3
                resident((1, HID)),                            # w4 row
                resident((1, 1)),                              # b4
            ],
            out_specs=pl.BlockSpec((tb, 1), lambda i: (i, 0)),
        ),
        compiler_params=pltpu.CompilerParams(
            dimension_semantics=("parallel",),
            vmem_limit_bytes=48 * 1024 * 1024,   # covers tb=1024 f32 input streaming
        ),
    )(P, T, *kernel_params)
    return out[:B]


def init_params(key):
    """Deterministic synthetic parameters matching nn.Linear shapes.

    Stored as (in, out) for x @ W; biases stored as (1, out) for broadcasting.
    """
    ks = jax.random.split(key, 8)

    def lin(kw, kb, din, dout):
        bound = 1.0 / jnp.sqrt(din)
        w = jax.random.uniform(kw, (din, dout), jnp.float32, -bound, bound)
        b = jax.random.uniform(kb, (1, dout), jnp.float32, -bound, bound)
        return w, b

    w1, b1 = lin(ks[0], ks[1], P_DIM + T_DIM, HID)
    w2, b2 = lin(ks[2], ks[3], HID, HID)
    w3, b3 = lin(ks[4], ks[5], HID, 1 * HID)
    w4, b4 = lin(ks[6], ks[7], HID, 1)
    return (w1, b1, w2, b2, w3, b3, w4, b4)


def reference(P, T, params):
    """Pure-JAX unfused f32 reference matching the PyTorch module."""
    w1, b1, w2, b2, w3, b3, w4, b4 = params
    x = jnp.concatenate([P, T], axis=1)
    x = x @ w1 + b1
    x = jnp.maximum(x @ w2 + b2, 0.0)
    x = jnp.maximum(x @ w3 + b3, 0.0)
    x = x @ w4 + b4
    return jnp.where(x > 20.0, x, jnp.log1p(jnp.exp(jnp.minimum(x, 20.0))))


def reference_fused_rounded(P, T, params, dtype):
    """Reference that applies the same fused+rounded weights as the kernel."""
    w1, b1, w2, b2, w3, b3, w4, b4 = params
    w12 = w1 @ w2
    b12 = b1 @ w2 + b2
    rnd = lambda w: w.astype(dtype).astype(jnp.float32)
    x = jnp.concatenate([P, T], axis=1)
    x = jnp.maximum(x @ rnd(w12) + b12, 0.0)
    x = jnp.maximum(x @ rnd(w3) + b3, 0.0)
    x = x @ w4 + b4
    return jnp.where(x > 20.0, x, jnp.log1p(jnp.exp(jnp.minimum(x, 20.0))))


if __name__ == "__main__":
    key = jax.random.PRNGKey(0)
    kP, kT, kparam = jax.random.split(key, 3)
    params = init_params(kparam)

    # 1) small batch, f32 weights, single grid step: validates that the
    #    lin1/lin2 fusion is numerically exact (up to f32 rounding).
    B = 16
    P = jax.random.normal(kP, (B, P_DIM), jnp.float32)
    T = jax.random.normal(kT, (B, T_DIM), jnp.float32)
    out = jax.block_until_ready(
        grasp_dist_field_dec(P, T, prepare_params(params, dtype=jnp.float32)))
    ref = reference(P, T, params)
    assert out.shape == (B, 1)
    assert jnp.allclose(out, ref, atol=1e-3, rtol=1e-3), (
        f"f32 fused single-tile: max abs diff {jnp.max(jnp.abs(out - ref))}")

    # 2) default (bf16-weight) path, auto tiling -> >= 2 grid steps at B=256.
    B2 = 256
    P2 = jax.random.normal(jax.random.fold_in(kP, 1), (B2, P_DIM), jnp.float32)
    T2 = jax.random.normal(jax.random.fold_in(kT, 1), (B2, T_DIM), jnp.float32)
    kp_bf16 = prepare_params(params)            # bf16 default
    out2 = jax.block_until_ready(grasp_dist_field_dec(P2, T2, kp_bf16))
    ref2 = reference_fused_rounded(P2, T2, params, jnp.bfloat16)
    assert out2.shape == (B2, 1)
    assert jnp.allclose(out2, ref2, atol=3e-2, rtol=3e-2), (
        f"bf16 fused tiled: max abs diff {jnp.max(jnp.abs(out2 - ref2))}")
    # sanity vs full-f32 reference (loose: covers bf16 weight rounding)
    ref2_f32 = reference(P2, T2, params)
    assert jnp.allclose(out2, ref2_f32, atol=1e-1, rtol=1e-1), (
        f"bf16 vs f32 ref: max abs diff {jnp.max(jnp.abs(out2 - ref2_f32))}")

    # 3) explicit 128-row tiles (2 grid steps) with a ragged batch -> padding path.
    B3 = 200
    P3 = jax.random.normal(jax.random.fold_in(kP, 2), (B3, P_DIM), jnp.float32)
    T3 = jax.random.normal(jax.random.fold_in(kT, 2), (B3, T_DIM), jnp.float32)
    out3 = jax.block_until_ready(grasp_dist_field_dec(P3, T3, kp_bf16, tb=128))
    ref3 = reference_fused_rounded(P3, T3, params, jnp.bfloat16)
    assert out3.shape == (B3, 1)
    assert jnp.allclose(out3, ref3, atol=3e-2, rtol=3e-2), (
        f"bf16 ragged tiled: max abs diff {jnp.max(jnp.abs(out3 - ref3))}")

    print("KERNEL_OK")
</pallas_src>

<mosaic_0001>
module attributes {stable_mosaic.version = 11 : i64} {
  func.func @gdf_kernel(%arg0: i32, %arg1: memref<16x1024xf32, #tpu.memory_space<vmem>>, %arg2: memref<16x6xf32, #tpu.memory_space<vmem>>, %arg3: memref<1024x512xf32, #tpu.memory_space<vmem>>, %arg4: memref<6x512xf32, #tpu.memory_space<vmem>>, %arg5: memref<1x512xf32, #tpu.memory_space<vmem>>, %arg6: memref<512x512xf32, #tpu.memory_space<vmem>>, %arg7: memref<1x512xf32, #tpu.memory_space<vmem>>, %arg8: memref<1x512xf32, #tpu.memory_space<vmem>>, %arg9: memref<1x1xf32, #tpu.memory_space<vmem>>, %arg10: memref<16x1xf32, #tpu.memory_space<vmem>>) attributes {dimension_semantics = [#tpu.dimension_semantics<parallel>], iteration_bounds = array<i64: 1>, scalar_prefetch = 0 : i64, scratch_operands = 0 : i64, tpu.core_type = #tpu.core_type<tc>, window_params = [{transform_indices = @transform_0, window_bounds = array<i64: 16, 1024>}, {transform_indices = @transform_1, window_bounds = array<i64: 16, 6>}, {pipeline_mode = #tpu.pipeline_mode<synchronous>, transform_indices = @transform_2, window_bounds = array<i64: 1024, 512>}, {pipeline_mode = #tpu.pipeline_mode<synchronous>, transform_indices = @transform_3, window_bounds = array<i64: 6, 512>}, {pipeline_mode = #tpu.pipeline_mode<synchronous>, transform_indices = @transform_4, window_bounds = array<i64: 1, 512>}, {pipeline_mode = #tpu.pipeline_mode<synchronous>, transform_indices = @transform_5, window_bounds = array<i64: 512, 512>}, {pipeline_mode = #tpu.pipeline_mode<synchronous>, transform_indices = @transform_6, window_bounds = array<i64: 1, 512>}, {pipeline_mode = #tpu.pipeline_mode<synchronous>, transform_indices = @transform_7, window_bounds = array<i64: 1, 512>}, {pipeline_mode = #tpu.pipeline_mode<synchronous>, transform_indices = @transform_8, window_bounds = array<i64: 1, 1>}, {transform_indices = @transform_9, window_bounds = array<i64: 16, 1>}]} {
    %c0 = arith.constant 0 : index
    %c0_0 = arith.constant 0 : index
    %0 = vector.load %arg1[%c0, %c0_0] : memref<16x1024xf32, #tpu.memory_space<vmem>>, vector<16x1024xf32>
    %c0_1 = arith.constant 0 : index
    %c0_2 = arith.constant 0 : index
    %1 = vector.load %arg2[%c0_1, %c0_2] : memref<16x6xf32, #tpu.memory_space<vmem>>, vector<16x6xf32>
    %c0_3 = arith.constant 0 : index
    %c0_4 = arith.constant 0 : index
    %2 = vector.load %arg3[%c0_3, %c0_4] : memref<1024x512xf32, #tpu.memory_space<vmem>>, vector<1024x512xf32>
    %cst = arith.constant dense<0.000000e+00> : vector<16x512xf32>
    %3 = tpu.matmul %0, %2, %cst {dimension_numbers = #tpu.dot_dimension_numbers<[1], [0], [0], [1], [0, 0, 1, 1], [], []>} : vector<16x1024xf32>, vector<1024x512xf32>, vector<16x512xf32> -> vector<16x512xf32>
    %c0_5 = arith.constant 0 : index
    %c0_6 = arith.constant 0 : index
    %4 = vector.load %arg4[%c0_5, %c0_6] : memref<6x512xf32, #tpu.memory_space<vmem>>, vector<6x512xf32>
    %cst_7 = arith.constant dense<0.000000e+00> : vector<16x512xf32>
    %5 = tpu.matmul %1, %4, %cst_7 {dimension_numbers = #tpu.dot_dimension_numbers<[1], [0], [0], [1], [0, 0, 1, 1], [], []>} : vector<16x6xf32>, vector<6x512xf32>, vector<16x512xf32> -> vector<16x512xf32>
    %6 = arith.addf %3, %5 : vector<16x512xf32>
    %c0_8 = arith.constant 0 : index
    %c0_9 = arith.constant 0 : index
    %7 = vector.load %arg5[%c0_8, %c0_9] : memref<1x512xf32, #tpu.memory_space<vmem>>, vector<1x512xf32>
    %8 = vector.broadcast %7 : vector<1x512xf32> to vector<16x512xf32>
    %9 = arith.addf %6, %8 : vector<16x512xf32>
    %cst_10 = arith.constant 0.000000e+00 : f32
    %10 = vector.broadcast %cst_10 : f32 to vector<16x512xf32>
    %11 = arith.maximumf %9, %10 : vector<16x512xf32>
    %c0_11 = arith.constant 0 : index
    %c0_12 = arith.constant 0 : index
    %12 = vector.load %arg6[%c0_11, %c0_12] : memref<512x512xf32, #tpu.memory_space<vmem>>, vector<512x512xf32>
    %cst_13 = arith.constant dense<0.000000e+00> : vector<16x512xf32>
    %13 = tpu.matmul %11, %12, %cst_13 {dimension_numbers = #tpu.dot_dimension_numbers<[1], [0], [0], [1], [0, 0, 1, 1], [], []>} : vector<16x512xf32>, vector<512x512xf32>, vector<16x512xf32> -> vector<16x512xf32>
    %c0_14 = arith.constant 0 : index
    %c0_15 = arith.constant 0 : index
    %14 = vector.load %arg7[%c0_14, %c0_15] : memref<1x512xf32, #tpu.memory_space<vmem>>, vector<1x512xf32>
    %15 = vector.broadcast %14 : vector<1x512xf32> to vector<16x512xf32>
    %16 = arith.addf %13, %15 : vector<16x512xf32>
    %cst_16 = arith.constant 0.000000e+00 : f32
    %17 = vector.broadcast %cst_16 : f32 to vector<16x512xf32>
    %18 = arith.maximumf %16, %17 : vector<16x512xf32>
    %c0_17 = arith.constant 0 : index
    %c0_18 = arith.constant 0 : index
    %19 = vector.load %arg8[%c0_17, %c0_18] : memref<1x512xf32, #tpu.memory_space<vmem>>, vector<1x512xf32>
    %20 = vector.broadcast %19 : vector<1x512xf32> to vector<16x512xf32>
    %21 = arith.mulf %18, %20 : vector<16x512xf32>
    %cst_19 = arith.constant dense<0.000000e+00> : vector<16xf32>
    %22 = vector.multi_reduction <add>, %21, %cst_19 [1] : vector<16x512xf32> to vector<16xf32>
    %23 = vector.shape_cast %22 : vector<16xf32> to vector<16x1xf32>
    %c0_20 = arith.constant 0 : index
    %c0_21 = arith.constant 0 : index
    %24 = vector.load %arg9[%c0_20, %c0_21] : memref<1x1xf32, #tpu.memory_space<vmem>>, vector<1x1xf32>
    %25 = vector.broadcast %24 : vector<1x1xf32> to vector<16x1xf32>
    %26 = arith.addf %23, %25 : vector<16x1xf32>
    %cst_22 = arith.constant 2.000000e+01 : f32
    %27 = vector.broadcast %cst_22 : f32 to vector<16x1xf32>
    %28 = arith.cmpf ogt, %26, %27 : vector<16x1xf32>
    %cst_23 = arith.constant 2.000000e+01 : f32
    %29 = vector.broadcast %cst_23 : f32 to vector<16x1xf32>
    %30 = arith.minimumf %26, %29 : vector<16x1xf32>
    %31 = math.exp %30 : vector<16x1xf32>
    %32 = math.log1p %31 : vector<16x1xf32>
    %33 = arith.select %28, %26, %32 : vector<16x1xi1>, vector<16x1xf32>
    %c0_24 = arith.constant 0 : index
    %c0_25 = arith.constant 0 : index
    %34 = vector.load %arg10[%c0_24, %c0_25] : memref<16x1xf32, #tpu.memory_space<vmem>>, vector<16x1xf32>
    tpu.vector_store %arg10[%c0_24, %c0_25], %33 {strides = array<i32>} : memref<16x1xf32, #tpu.memory_space<vmem>>, vector<16x1xf32>,
    return
  }
  func.func @transform_0(%arg0: i32) -> (i32, i32) {
    %c0_i32 = arith.constant 0 : i32
    %c0_i32_0 = arith.constant 0 : i32
    return %arg0, %c0_i32 : i32, i32
  }
  func.func @transform_1(%arg0: i32) -> (i32, i32) {
    %c0_i32 = arith.constant 0 : i32
    %c0_i32_0 = arith.constant 0 : i32
    return %arg0, %c0_i32 : i32, i32
  }
  func.func @transform_2(%arg0: i32) -> (i32, i32) {
    %c0_i32 = arith.constant 0 : i32
    %c0_i32_0 = arith.constant 0 : i32
    %c0_i32_1 = arith.constant 0 : i32
    return %c0_i32, %c0_i32_0 : i32, i32
  }
  func.func @transform_3(%arg0: i32) -> (i32, i32) {
    %c0_i32 = arith.constant 0 : i32
    %c0_i32_0 = arith.constant 0 : i32
    %c0_i32_1 = arith.constant 0 : i32
    return %c0_i32, %c0_i32_0 : i32, i32
  }
  func.func @transform_4(%arg0: i32) -> (i32, i32) {
    %c0_i32 = arith.constant 0 : i32
    %c0_i32_0 = arith.constant 0 : i32
    %c0_i32_1 = arith.constant 0 : i32
    return %c0_i32, %c0_i32_0 : i32, i32
  }
  func.func @transform_5(%arg0: i32) -> (i32, i32) {
    %c0_i32 = arith.constant 0 : i32
    %c0_i32_0 = arith.constant 0 : i32
    %c0_i32_1 = arith.constant 0 : i32
    return %c0_i32, %c0_i32_0 : i32, i32
  }
  func.func @transform_6(%arg0: i32) -> (i32, i32) {
    %c0_i32 = arith.constant 0 : i32
    %c0_i32_0 = arith.constant 0 : i32
    %c0_i32_1 = arith.constant 0 : i32
    return %c0_i32, %c0_i32_0 : i32, i32
  }
  func.func @transform_7(%arg0: i32) -> (i32, i32) {
    %c0_i32 = arith.constant 0 : i32
    %c0_i32_0 = arith.constant 0 : i32
    %c0_i32_1 = arith.constant 0 : i32
    return %c0_i32, %c0_i32_0 : i32, i32
  }
  func.func @transform_8(%arg0: i32) -> (i32, i32) {
    %c0_i32 = arith.constant 0 : i32
    %c0_i32_0 = arith.constant 0 : i32
    %c0_i32_1 = arith.constant 0 : i32
    return %c0_i32, %c0_i32_0 : i32, i32
  }
  func.func @transform_9(%arg0: i32) -> (i32, i32) {
    %c0_i32 = arith.constant 0 : i32
    %c0_i32_0 = arith.constant 0 : i32
    return %arg0, %c0_i32 : i32, i32
  }
}

</mosaic_0001>

<llo_original>
// kernel: tpu_custom_call.1
$region0: #{tpu_custom_call.1}
  #allocation0 [shape = 'u32[]', space=smem, size = 0x4, offset = 0x4, fixed_abs, tag = 'smem constant byte address 0x4 - core index']
  #allocation1 [shape = 'u32[144,128]{1,0:T(1,128)}', space=vmem, size = 0x12000, scoped, tag = 'internal scratch']
  #allocation2 [shape = 'f32[1,1]{1,0:T(1,128)S(1)}', space=vmem, size = 0x200, scoped, tag = 'scoped memory for tpu_custom_call.1']
  %s0 = inlined_call_operand.hbm [shape: f32[16,1024], index: 0, kind: input, shape index: {}]
  %s1 = inlined_call_operand.vmem [shape: f32[16,6], index: 1, kind: input, shape index: {}]
  %s2 = inlined_call_operand.hbm [shape: f32[1024,512], index: 2, kind: input, shape index: {}]
  %s3 = inlined_call_operand.hbm [shape: f32[6,512], index: 3, kind: input, shape index: {}]
  %s4 = inlined_call_operand.hbm [shape: f32[1,512], index: 4, kind: input, shape index: {}]
  %s5 = inlined_call_operand.hbm [shape: f32[512,512], index: 5, kind: input, shape index: {}]
  %s6 = inlined_call_operand.hbm [shape: f32[1,512], index: 6, kind: input, shape index: {}]
  %s7 = inlined_call_operand.hbm [shape: f32[1,512], index: 7, kind: input, shape index: {}]
  %s8 = inlined_call_operand.<no memory space> [shape: f32[1,1], index: 8, kind: input, shape index: {}]
  %s9 = inlined_call_operand.vmem [shape: f32[16,1], index: 9, kind: output, shape index: {}]
  %s10 = sld [smem:[#allocation0]]
  $region74: #{tpu_custom_call.1} parent=0
    _
  %s12 = ssub.s32 1, %s10
  %s13 = scalar_select 0, %s12, %s10
  %v14 = vstv %s8
  %15 = vst [vmem:[#allocation2] sm:$0x1] %v14
  $region1: #{tpu_custom_call.1} parent=0
    #allocation3 [shape = 'u8[65536]{0}', space=vmem, size = 0x10000, scoped, tag = 'input window, operand 0, single buffered']
    #allocation4 [shape = 's32[1]{0}', space=sflag, size = 0x4, scoped, tag = 'scoped memory for tpu_custom_call.1']
    #allocation5 [shape = 'u8[2097152]{0}', space=vmem, size = 0x200000, scoped, tag = 'input window, operand 2, single buffered']
    #allocation6 [shape = 's32[1]{0}', space=sflag, size = 0x4, scoped, tag = 'scoped memory for tpu_custom_call.1']
    #allocation7 [shape = 'u8[16384]{0}', space=vmem, size = 0x4000, scoped, tag = 'input window, operand 3, single buffered']
    #allocation8 [shape = 'u8[2048]{0}', space=vmem, size = 0x800, scoped, tag = 'input window, operand 4, single buffered']
    #allocation9 [shape = 's32[1]{0}', space=sflag, size = 0x4, scoped, tag = 'scoped memory for tpu_custom_call.1']
    #allocation10 [shape = 'u8[1048576]{0}', space=vmem, size = 0x100000, scoped, tag = 'input window, operand 5, single buffered']
    #allocation11 [shape = 'u8[2048]{0}', space=vmem, size = 0x800, scoped, tag = 'input window, operand 6, single buffered']
    #allocation12 [shape = 's32[1]{0}', space=sflag, size = 0x4, scoped, tag = 'scoped memory for tpu_custom_call.1']
    #allocation13 [shape = 'u8[2048]{0}', space=vmem, size = 0x800, scoped, tag = 'input window, operand 7, single buffered']
    %16 = vsyncpa [#allocation4], 0
    %17 = vsyncpa [#allocation6], 0
    %18 = vsyncpa [#allocation9], 0
    %19 = vsyncpa [#allocation12], 0
    // Predicated region
    $region2: #{tpu_custom_call.1} parent=1 // pred_check
      _
    $region3: #{tpu_custom_call.1} parent=1 // pred_check_branch
      %21 = sbr.rel (0) target = $region5
    $region4: #{tpu_custom_call.1} parent=1 // pred_region
      %s23 = ssub.s32 2048, 2048
      %24 = vsyncadd [#allocation4], %s23
      %s25 = sshll.u32 [#allocation3], 4
      %s26 = int_to_ptr.vmem [resolvable:$true] %s25
      %31 = dma.hbm_to_vmem [thread:$0]  %s0, 2048, %s26, [#allocation4], 1024, 1024, 64
    $region5: #{tpu_custom_call.1} parent=1 // pred_fallthru
      _
    // Predicated region
    $region6: #{tpu_custom_call.1} parent=1 // pred_check
      _
    $region7: #{tpu_custom_call.1} parent=1 // pred_check_branch
      %33 = sbr.rel (0) target = $region9
    $region8: #{tpu_custom_call.1} parent=1 // pred_region
      _
    $region9: #{tpu_custom_call.1} parent=1 // pred_fallthru
      _
    // Predicated region
    $region10: #{tpu_custom_call.1} parent=1 // pred_check
      _
    $region11: #{tpu_custom_call.1} parent=1 // pred_check_branch
      %35 = sbr.rel (0) target = $region13
    $region12: #{tpu_custom_call.1} parent=1 // pred_region
      %s37 = ssub.s32 65536, 65536
      %38 = vsyncadd [#allocation6], %s37
      %s39 = sshll.u32 [#allocation5], 4
      %s40 = int_to_ptr.vmem [resolvable:$true] %s39
      %45 = dma.hbm_to_vmem [thread:$0]  %s2, 65536, %s40, [#allocation6], 512, 512, 32
    $region13: #{tpu_custom_call.1} parent=1 // pred_fallthru
      _
    // Predicated region
    $region14: #{tpu_custom_call.1} parent=1 // pred_check
      _
    $region15: #{tpu_custom_call.1} parent=1 // pred_check_branch
      %47 = sbr.rel (0) target = $region17
    $region16: #{tpu_custom_call.1} parent=1 // pred_region
      %s49 = ssub.s32 512, 512
      %50 = vsyncadd [#allocation6], %s49
      %s52 = sshll.u32 [#allocation7], 4
      %s53 = int_to_ptr.vmem [resolvable:$true] %s52
      %55 = dma.hbm_to_vmem [thread:$0]  %s3, 512, %s53, [#allocation6]
    $region17: #{tpu_custom_call.1} parent=1 // pred_fallthru
      _
    // Predicated region
    $region18: #{tpu_custom_call.1} parent=1 // pred_check
      _
    $region19: #{tpu_custom_call.1} parent=1 // pred_check_branch
      %57 = sbr.rel (0) target = $region21
    $region20: #{tpu_custom_call.1} parent=1 // pred_region
      %s59 = ssub.s32 64, 64
      %60 = vsyncadd [#allocation9], %s59
      %s62 = sshll.u32 [#allocation8], 4
      %s63 = int_to_ptr.vmem [resolvable:$true] %s62
      %65 = dma.hbm_to_vmem [thread:$0]  %s4, 64, %s63, [#allocation9]
    $region21: #{tpu_custom_call.1} parent=1 // pred_fallthru
      _
    // Predicated region
    $region22: #{tpu_custom_call.1} parent=1 // pred_check
      _
    $region23: #{tpu_custom_call.1} parent=1 // pred_check_branch
      %67 = sbr.rel (0) target = $region25
    $region24: #{tpu_custom_call.1} parent=1 // pred_region
      %s69 = ssub.s32 32768, 32768
      %70 = vsyncadd [#allocation9], %s69
      %s71 = sshll.u32 [#allocation10], 4
      %s72 = int_to_ptr.vmem [resolvable:$true] %s71
      %77 = dma.hbm_to_vmem [thread:$0]  %s5, 32768, %s72, [#allocation9], 512, 512, 32
    $region25: #{tpu_custom_call.1} parent=1 // pred_fallthru
      _
    // Predicated region
    $region26: #{tpu_custom_call.1} parent=1 // pred_check
      _
    $region27: #{tpu_custom_call.1} parent=1 // pred_check_branch
      %79 = sbr.rel (0) target = $region29
    $region28: #{tpu_custom_call.1} parent=1 // pred_region
      %s81 = ssub.s32 64, 64
      %82 = vsyncadd [#allocation12], %s81
      %s84 = sshll.u32 [#allocation11], 4
      %s85 = int_to_ptr.vmem [resolvable:$true] %s84
      %87 = dma.hbm_to_vmem [thread:$0]  %s6, 64, %s85, [#allocation12]
    $region29: #{tpu_custom_call.1} parent=1 // pred_fallthru
      _
    // Predicated region
    $region30: #{tpu_custom_call.1} parent=1 // pred_check
      _
    $region31: #{tpu_custom_call.1} parent=1 // pred_check_branch
      %89 = sbr.rel (0) target = $region33
    $region32: #{tpu_custom_call.1} parent=1 // pred_region
      %s91 = ssub.s32 64, 64
      %92 = vsyncadd [#allocation12], %s91
      %s94 = sshll.u32 [#allocation13], 4
      %s95 = int_to_ptr.vmem [resolvable:$true] %s94
      %97 = dma.hbm_to_vmem [thread:$0]  %s7, 64, %s95, [#allocation12]
    $region33: #{tpu_custom_call.1} parent=1 // pred_fallthru
      _
    // Predicated region
    $region34: #{tpu_custom_call.1} parent=1 // pred_check
      _
    $region35: #{tpu_custom_call.1} parent=1 // pred_check_branch
      %99 = sbr.rel (0) target = $region37
    $region36: #{tpu_custom_call.1} parent=1 // pred_region
      _
    $region37: #{tpu_custom_call.1} parent=1 // pred_fallthru
      _
    // Predicated region
    $region38: #{tpu_custom_call.1} parent=1 // pred_check
      _
    $region39: #{tpu_custom_call.1} parent=1 // pred_check_branch
      %101 = sbr.rel (0) target = $region41
    $region40: #{tpu_custom_call.1} parent=1 // pred_region
      %102 = dma.done [#allocation4], 2048
    $region41: #{tpu_custom_call.1} parent=1 // pred_fallthru
      _
    // Predicated region
    $region42: #{tpu_custom_call.1} parent=1 // pred_check
      _
    $region43: #{tpu_custom_call.1} parent=1 // pred_check_branch
      %104 = sbr.rel (0) target = $region45
    $region44: #{tpu_custom_call.1} parent=1 // pred_region
      %105 = dma.done [#allocation6], 65536
    $region45: #{tpu_custom_call.1} parent=1 // pred_fallthru
      _
    // Predicated region
    $region46: #{tpu_custom_call.1} parent=1 // pred_check
      _
    $region47: #{tpu_custom_call.1} parent=1 // pred_check_branch
      %107 = sbr.rel (0) target = $region49
    $region48: #{tpu_custom_call.1} parent=1 // pred_region
      %108 = dma.done [#allocation6], 512
    $region49: #{tpu_custom_call.1} parent=1 // pred_fallthru
      _
    // Predicated region
    $region50: #{tpu_custom_call.1} parent=1 // pred_check
      _
    $region51: #{tpu_custom_call.1} parent=1 // pred_check_branch
      %110 = sbr.rel (0) target = $region53
    $region52: #{tpu_custom_call.1} parent=1 // pred_region
      %111 = dma.done [#allocation9], 64
    $region53: #{tpu_custom_call.1} parent=1 // pred_fallthru
      _
    // Predicated region
    $region54: #{tpu_custom_call.1} parent=1 // pred_check
      _
    $region55: #{tpu_custom_call.1} parent=1 // pred_check_branch
      %113 = sbr.rel (0) target = $region57
    $region56: #{tpu_custom_call.1} parent=1 // pred_region
      %114 = dma.done [#allocation9], 32768
    $region57: #{tpu_custom_call.1} parent=1 // pred_fallthru
      _
    // Predicated region
    $region58: #{tpu_custom_call.1} parent=1 // pred_check
      _
    $region59: #{tpu_custom_call.1} parent=1 // pred_check_branch
      %116 = sbr.rel (0) target = $region61
    $region60: #{tpu_custom_call.1} parent=1 // pred_region
      %117 = dma.done [#allocation12], 64
    $region61: #{tpu_custom_call.1} parent=1 // pred_fallthru
      _
    // Predicated region
    $region62: #{tpu_custom_call.1} parent=1 // pred_check
      _
    $region63: #{tpu_custom_call.1} parent=1 // pred_check_branch
      %119 = sbr.rel (0) target = $region65
    $region64: #{tpu_custom_call.1} parent=1 // pred_region
      %120 = dma.done [#allocation12], 64
    $region65: #{tpu_custom_call.1} parent=1 // pred_fallthru
      _
    %v121 = vld [vmem:[#allocation3] sm:$0xff]
    %v122 = vld [vmem:[#allocation3 + $0x8] sm:$0xff]
    %v123 = vld [vmem:[#allocation3 + $0x10] sm:$0xff]
    %v124 = vld [vmem:[#allocation3 + $0x18] sm:$0xff]
    %v125 = vld [vmem:[#allocation3 + $0x20] sm:$0xff]
    %v126 = vld [vmem:[#allocation3 + $0x28] sm:$0xff]
    %v127 = vld [vmem:[#allocation3 + $0x30] sm:$0xff]
    %v128 = vld [vmem:[#allocation3 + $0x38] sm:$0xff]
    %v129 = vld [vmem:[#allocation3 + $0x40] sm:$0xff]
    %v130 = vld [vmem:[#allocation3 + $0x48] sm:$0xff]
    %v131 = vld [vmem:[#allocation3 + $0x50] sm:$0xff]
    %v132 = vld [vmem:[#allocation3 + $0x58] sm:$0xff]
    %v133 = vld [vmem:[#allocation3 + $0x60] sm:$0xff]
    %v134 = vld [vmem:[#allocation3 + $0x68] sm:$0xff]
    %v135 = vld [vmem:[#allocation3 + $0x70] sm:$0xff]
    %v136 = vld [vmem:[#allocation3 + $0x78] sm:$0xff]
    %v137 = vld [vmem:[%s1] sm:$0xff]
    %v138 = vld [vmem:[%s1 + $0x8] sm:$0xff]
    %v139 = vld [vmem:[#allocation5] sm:$0xff]
    %v140 = vld [vmem:[#allocation5 + $0x8] sm:$0xff]
    %v141 = vld [vmem:[#allocation5 + $0x10] sm:$0xff]
    %v142 = vld [vmem:[#allocation5 + $0x18] sm:$0xff]
    %v143 = vld [vmem:[#allocation5 + $0x20] sm:$0xff]
    %v144 = vld [vmem:[#allocation5 + $0x28] sm:$0xff]
    %v145 = vld [vmem:[#allocation5 + $0x30] sm:$0xff]
    %v146 = vld [vmem:[#allocation5 + $0x38] sm:$0xff]
    %v147 = vld [vmem:[#allocation5 + $0x40] sm:$0xff]
    %v148 = vld [vmem:[#allocation5 + $0x48] sm:$0xff]
    %v149 = vld [vmem:[#allocation5 + $0x50] sm:$0xff]
    %v150 = vld [vmem:[#allocation5 + $0x58] sm:$0xff]
    %v151 = vld [vmem:[#allocation5 + $0x60] sm:$0xff]
    %v152 = vld [vmem:[#allocation5 + $0x68] sm:$0xff]
    %v153 = vld [vmem:[#allocation5 + $0x70] sm:$0xff]
    %v154 = vld [vmem:[#allocation5 + $0x78] sm:$0xff]
    %v155 = vld [vmem:[#allocation5 + $0x80] sm:$0xff]
    %v156 = vld [vmem:[#allocation5 + $0x88] sm:$0xff]
    %v157 = vld [vmem:[#allocation5 + $0x90] sm:$0xff]
    %v158 = vld [vmem:[#allocation5 + $0x98] sm:$0xff]
    %v159 = vld [vmem:[#allocation5 + $0xa0] sm:$0xff]
    %v160 = vld [vmem:[#allocation5 + $0xa8] sm:$0xff]
    %v161 = vld [vmem:[#allocation5 + $0xb0] sm:$0xff]
    %v162 = vld [vmem:[#allocation5 + $0xb8] sm:$0xff]
    %v163 = vld [vmem:[#allocation5 + $0xc0] sm:$0xff]
    %v164 = vld [vmem:[#allocation5 + $0xc8] sm:$0xff]
    %v165 = vld [vmem:[#allocation5 + $0xd0] sm:$0xff]
    %v166 = vld [vmem:[#allocation5 + $0xd8] sm:$0xff]
    %v167 = vld [vmem:[#allocation5 + $0xe0] sm:$0xff]
    %v168 = vld [vmem:[#allocation5 + $0xe8] sm:$0xff]
    %v169 = vld [vmem:[#allocation5 + $0xf0] sm:$0xff]
    %v170 = vld [vmem:[#allocation5 + $0xf8] sm:$0xff]
    %v171 = vld [vmem:[#allocation5 + $0x100] sm:$0xff]
    %v172 = vld [vmem:[#allocation5 + $0x108] sm:$0xff]
    %v173 = vld [vmem:[#allocation5 + $0x110] sm:$0xff]
    %v174 = vld [vmem:[#allocation5 + $0x118] sm:$0xff]
    %v175 = vld [vmem:[#allocation5 + $0x120] sm:$0xff]
    %v176 = vld [vmem:[#allocation5 + $0x128] sm:$0xff]
    %v177 = vld [vmem:[#allocation5 + $0x130] sm:$0xff]
    %v178 = vld [vmem:[#allocation5 + $0x138] sm:$0xff]
    %v179 = vld [vmem:[#allocation5 + $0x140] sm:$0xff]
    %v180 = vld [vmem:[#allocation5 + $0x148] sm:$0xff]
    %v181 = vld [vmem:[#allocation5 + $0x150] sm:$0xff]
    %v182 = vld [vmem:[#allocation5 + $0x158] sm:$0xff]
    %v183 = vld [vmem:[#allocation5 + $0x160] sm:$0xff]
    %v184 = vld [vmem:[#allocation5 + $0x168] sm:$0xff]
    %v185 = vld [vmem:[#allocation5 + $0x170] sm:$0xff]
    %v186 = vld [vmem:[#allocation5 + $0x178] sm:$0xff]
    %v187 = vld [vmem:[#allocation5 + $0x180] sm:$0xff]
    %v188 = vld [vmem:[#allocation5 + $0x188] sm:$0xff]
    %v189 = vld [vmem:[#allocation5 + $0x190] sm:$0xff]
    %v190 = vld [vmem:[#allocation5 + $0x198] sm:$0xff]
    %v191 = vld [vmem:[#allocation5 + $0x1a0] sm:$0xff]
    %v192 = vld [vmem:[#allocation5 + $0x1a8] sm:$0xff]
    %v193 = vld [vmem:[#allocation5 + $0x1b0] sm:$0xff]
    %v194 = vld [vmem:[#allocation5 + $0x1b8] sm:$0xff]
    %v195 = vld [vmem:[#allocation5 + $0x1c0] sm:$0xff]
    %v196 = vld [vmem:[#allocation5 + $0x1c8] sm:$0xff]
    %v197 = vld [vmem:[#allocation5 + $0x1d0] sm:$0xff]
    %v198 = vld [vmem:[#allocation5 + $0x1d8] sm:$0xff]
    %v199 = vld [vmem:[#allocation5 + $0x1e0] sm:$0xff]
    %v200 = vld [vmem:[#allocation5 + $0x1e8] sm:$0xff]
    %v201 = vld [vmem:[#allocation5 + $0x1f0] sm:$0xff]
    %v202 = vld [vmem:[#allocation5 + $0x1f8] sm:$0xff]
    %v203 = vld [vmem:[#allocation5 + $0x200] sm:$0xff]
    %v204 = vld [vmem:[#allocation5 + $0x208] sm:$0xff]
    %v205 = vld [vmem:[#allocation5 + $0x210] sm:$0xff]
    %v206 = vld [vmem:[#allocation5 + $0x218] sm:$0xff]
    %v207 = vld [vmem:[#allocation5 + $0x220] sm:$0xff]
    %v208 = vld [vmem:[#allocation5 + $0x228] sm:$0xff]
    %v209 = vld [vmem:[#allocation5 + $0x230] sm:$0xff]
    %v210 = vld [vmem:[#allocation5 + $0x238] sm:$0xff]
    %v211 = vld [vmem:[#allocation5 + $0x240] sm:$0xff]
    %v212 = vld [vmem:[#allocation5 + $0x248] sm:$0xff]
    %v213 = vld [vmem:[#allocation5 + $0x250] sm:$0xff]
    %v214 = vld [vmem:[#allocation5 + $0x258] sm:$0xff]
    %v215 = vld [vmem:[#allocation5 + $0x260] sm:$0xff]
    %v216 = vld [vmem:[#allocation5 + $0x268] sm:$0xff]
    %v217 = vld [vmem:[#allocation5 + $0x270] sm:$0xff]
    %v218 = vld [vmem:[#allocation5 + $0x278] sm:$0xff]
    %v219 = vld [vmem:[#allocation5 + $0x280] sm:$0xff]
    %v220 = vld [vmem:[#allocation5 + $0x288] sm:$0xff]
    %v221 = vld [vmem:[#allocation5 + $0x290] sm:$0xff]
    %v222 = vld [vmem:[#allocation5 + $0x298] sm:$0xff]
    %v223 = vld [vmem:[#allocation5 + $0x2a0] sm:$0xff]
    %v224 = vld [vmem:[#allocation5 + $0x2a8] sm:$0xff]
    %v225 = vld [vmem:[#allocation5 + $0x2b0] sm:$0xff]
    %v226 = vld [vmem:[#allocation5 + $0x2b8] sm:$0xff]
    %v227 = vld [vmem:[#allocation5 + $0x2c0] sm:$0xff]
    %v228 = vld [vmem:[#allocation5 + $0x2c8] sm:$0xff]
    %v229 = vld [vmem:[#allocation5 + $0x2d0] sm:$0xff]
    %v230 = vld [vmem:[#allocation5 + $0x2d8] sm:$0xff]
    %v231 = vld [vmem:[#allocation5 + $0x2e0] sm:$0xff]
    %v232 = vld [vmem:[#allocation5 + $0x2e8] sm:$0xff]
    %v233 = vld [vmem:[#allocation5 + $0x2f0] sm:$0xff]
    %v234 = vld [vmem:[#allocation5 + $0x2f8] sm:$0xff]
    %v235 = vld [vmem:[#allocation5 + $0x300] sm:$0xff]
    %v236 = vld [vmem:[#allocation5 + $0x308] sm:$0xff]
    %v237 = vld [vmem:[#allocation5 + $0x310] sm:$0xff]
    %v238 = vld [vmem:[#allocation5 + $0x318] sm:$0xff]
    %v239 = vld [vmem:[#allocation5 + $0x320] sm:$0xff]
    %v240 = vld [vmem:[#allocation5 + $0x328] sm:$0xff]
    %v241 = vld [vmem:[#allocation5 + $0x330] sm:$0xff]
    %v242 = vld [vmem:[#allocation5 + $0x338] sm:$0xff]
    %v243 = vld [vmem:[#allocation5 + $0x340] sm:$0xff]
    %v244 = vld [vmem:[#allocation5 + $0x348] sm:$0xff]
    %v245 = vld [vmem:[#allocation5 + $0x350] sm:$0xff]
    %v246 = vld [vmem:[#allocation5 + $0x358] sm:$0xff]
    %v247 = vld [vmem:[#allocation5 + $0x360] sm:$0xff]
    %v248 = vld [vmem:[#allocation5 + $0x368] sm:$0xff]
    %v249 = vld [vmem:[#allocation5 + $0x370] sm:$0xff]
    %v250 = vld [vmem:[#allocation5 + $0x378] sm:$0xff]
    %v251 = vld [vmem:[#allocation5 + $0x380] sm:$0xff]
    %v252 = vld [vmem:[#allocation5 + $0x388] sm:$0xff]
    %v253 = vld [vmem:[#allocation5 + $0x390] sm:$0xff]
    %v254 = vld [vmem:[#allocation5 + $0x398] sm:$0xff]
    %v255 = vld [vmem:[#allocation5 + $0x3a0] sm:$0xff]
    %v256 = vld [vmem:[#allocation5 + $0x3a8] sm:$0xff]
    %v257 = vld [vmem:[#allocation5 + $0x3b0] sm:$0xff]
    %v258 = vld [vmem:[#allocation5 + $0x3b8] sm:$0xff]
    %v259 = vld [vmem:[#allocation5 + $0x3c0] sm:$0xff]
    %v260 = vld [vmem:[#allocation5 + $0x3c8] sm:$0xff]
    %v261 = vld [vmem:[#allocation5 + $0x3d0] sm:$0xff]
    %v262 = vld [vmem:[#allocation5 + $0x3d8] sm:$0xff]
    %v263 = vld [vmem:[#allocation5 + $0x3e0] sm:$0xff]
    %v264 = vld [vmem:[#allocation5 + $0x3e8] sm:$0xff]
    %v265 = vld [vmem:[#allocation5 + $0x3f0] sm:$0xff]
    %v266 = vld [vmem:[#allocation5 + $0x3f8] sm:$0xff]
    %v267 = vld [vmem:[#allocation5 + $0x400] sm:$0xff]
    %v268 = vld [vmem:[#allocation5 + $0x408] sm:$0xff]
    %v269 = vld [vmem:[#allocation5 + $0x410] sm:$0xff]
    %v270 = vld [vmem:[#allocation5 + $0x418] sm:$0xff]
    %v271 = vld [vmem:[#allocation5 + $0x420] sm:$0xff]
    %v272 = vld [vmem:[#allocation5 + $0x428] sm:$0xff]
    %v273 = vld [vmem:[#allocation5 + $0x430] sm:$0xff]
    %v274 = vld [vmem:[#allocation5 + $0x438] sm:$0xff]
    %v275 = vld [vmem:[#allocation5 + $0x440] sm:$0xff]
    %v276 = vld [vmem:[#allocation5 + $0x448] sm:$0xff]
    %v277 = vld [vmem:[#allocation5 + $0x450] sm:$0xff]
    %v278 = vld [vmem:[#allocation5 + $0x458] sm:$0xff]
    %v279 = vld [vmem:[#allocation5 + $0x460] sm:$0xff]
    %v280 = vld [vmem:[#allocation5 + $0x468] sm:$0xff]
    %v281 = vld [vmem:[#allocation5 + $0x470] sm:$0xff]
    %v282 = vld [vmem:[#allocation5 + $0x478] sm:$0xff]
    %v283 = vld [vmem:[#allocation5 + $0x480] sm:$0xff]
    %v284 = vld [vmem:[#allocation5 + $0x488] sm:$0xff]
    %v285 = vld [vmem:[#allocation5 + $0x490] sm:$0xff]
    %v286 = vld [vmem:[#allocation5 + $0x498] sm:$0xff]
    %v287 = vld [vmem:[#allocation5 + $0x4a0] sm:$0xff]
    %v288 = vld [vmem:[#allocation5 + $0x4a8] sm:$0xff]
    %v289 = vld [vmem:[#allocation5 + $0x4b0] sm:$0xff]
    %v290 = vld [vmem:[#allocation5 + $0x4b8] sm:$0xff]
    %v291 = vld [vmem:[#allocation5 + $0x4c0] sm:$0xff]
    %v292 = vld [vmem:[#allocation5 + $0x4c8] sm:$0xff]
    %v293 = vld [vmem:[#allocation5 + $0x4d0] sm:$0xff]
    %v294 = vld [vmem:[#allocation5 + $0x4d8] sm:$0xff]
    %v295 = vld [vmem:[#allocation5 + $0x4e0] sm:$0xff]
    %v296 = vld [vmem:[#allocation5 + $0x4e8] sm:$0xff]
    %v297 = vld [vmem:[#allocation5 + $0x4f0] sm:$0xff]
    %v298 = vld [vmem:[#allocation5 + $0x4f8] sm:$0xff]
    %v299 = vld [vmem:[#allocation5 + $0x500] sm:$0xff]
    %v300 = vld [vmem:[#allocation5 + $0x508] sm:$0xff]
    %v301 = vld [vmem:[#allocation5 + $0x510] sm:$0xff]
    %v302 = vld [vmem:[#allocation5 + $0x518] sm:$0xff]
    %v303 = vld [vmem:[#allocation5 + $0x520] sm:$0xff]
    %v304 = vld [vmem:[#allocation5 + $0x528] sm:$0xff]
    %v305 = vld [vmem:[#allocation5 + $0x530] sm:$0xff]
    %v306 = vld [vmem:[#allocation5 + $0x538] sm:$0xff]
    %v307 = vld [vmem:[#allocation5 + $0x540] sm:$0xff]
    %v308 = vld [vmem:[#allocation5 + $0x548] sm:$0xff]
    %v309 = vld [vmem:[#allocation5 + $0x550] sm:$0xff]
    %v310 = vld [vmem:[#allocation5 + $0x558] sm:$0xff]
    %v311 = vld [vmem:[#allocation5 + $0x560] sm:$0xff]
    %v312 = vld [vmem:[#allocation5 + $0x568] sm:$0xff]
    %v313 = vld [vmem:[#allocation5 + $0x570] sm:$0xff]
    %v314 = vld [vmem:[#allocation5 + $0x578] sm:$0xff]
    %v315 = vld [vmem:[#allocation5 + $0x580] sm:$0xff]
    %v316 = vld [vmem:[#allocation5 + $0x588] sm:$0xff]
    %v317 = vld [vmem:[#allocation5 + $0x590] sm:$0xff]
    %v318 = vld [vmem:[#allocation5 + $0x598] sm:$0xff]
    %v319 = vld [vmem:[#allocation5 + $0x5a0] sm:$0xff]
    %v320 = vld [vmem:[#allocation5 + $0x5a8] sm:$0xff]
    %v321 = vld [vmem:[#allocation5 + $0x5b0] sm:$0xff]
    %v322 = vld [vmem:[#allocation5 + $0x5b8] sm:$0xff]
    %v323 = vld [vmem:[#allocation5 + $0x5c0] sm:$0xff]
    %v324 = vld [vmem:[#allocation5 + $0x5c8] sm:$0xff]
    %v325 = vld [vmem:[#allocation5 + $0x5d0] sm:$0xff]
    %v326 = vld [vmem:[#allocation5 + $0x5d8] sm:$0xff]
    %v327 = vld [vmem:[#allocation5 + $0x5e0] sm:$0xff]
    %v328 = vld [vmem:[#allocation5 + $0x5e8] sm:$0xff]
    %v329 = vld [vmem:[#allocation5 + $0x5f0] sm:$0xff]
    %v330 = vld [vmem:[#allocation5 + $0x5f8] sm:$0xff]
    %v331 = vld [vmem:[#allocation5 + $0x600] sm:$0xff]
    %v332 = vld [vmem:[#allocation5 + $0x608] sm:$0xff]
    %v333 = vld [vmem:[#allocation5 + $0x610] sm:$0xff]
    %v334 = vld [vmem:[#allocation5 + $0x618] sm:$0xff]
    %v335 = vld [vmem:[#allocation5 + $0x620] sm:$0xff]
    %v336 = vld [vmem:[#allocation5 + $0x628] sm:$0xff]
    %v337 = vld [vmem:[#allocation5 + $0x630] sm:$0xff]
    %v338 = vld [vmem:[#allocation5 + $0x638] sm:$0xff]
    %v339 = vld [vmem:[#allocation5 + $0x640] sm:$0xff]
    %v340 = vld [vmem:[#allocation5 + $0x648] sm:$0xff]
    %v341 = vld [vmem:[#allocation5 + $0x650] sm:$0xff]
    %v342 = vld [vmem:[#allocation5 + $0x658] sm:$0xff]
    %v343 = vld [vmem:[#allocation5 + $0x660] sm:$0xff]
    %v344 = vld [vmem:[#allocation5 + $0x668] sm:$0xff]
    %v345 = vld [vmem:[#allocation5 + $0x670] sm:$0xff]
    %v346 = vld [vmem:[#allocation5 + $0x678] sm:$0xff]
    %v347 = vld [vmem:[#allocation5 + $0x680] sm:$0xff]
    %v348 = vld [vmem:[#allocation5 + $0x688] sm:$0xff]
    %v349 = vld [vmem:[#allocation5 + $0x690] sm:$0xff]
    %v350 = vld [vmem:[#allocation5 + $0x698] sm:$0xff]
    %v351 = vld [vmem:[#allocation5 + $0x6a0] sm:$0xff]
    %v352 = vld [vmem:[#allocation5 + $0x6a8] sm:$0xff]
    %v353 = vld [vmem:[#allocation5 + $0x6b0] sm:$0xff]
    %v354 = vld [vmem:[#allocation5 + $0x6b8] sm:$0xff]
    %v355 = vld [vmem:[#allocation5 + $0x6c0] sm:$0xff]
    %v356 = vld [vmem:[#allocation5 + $0x6c8] sm:$0xff]
    %v357 = vld [vmem:[#allocation5 + $0x6d0] sm:$0xff]
    %v358 = vld [vmem:[#allocation5 + $0x6d8] sm:$0xff]
    %v359 = vld [vmem:[#allocation5 + $0x6e0] sm:$0xff]
    %v360 = vld [vmem:[#allocation5 + $0x6e8] sm:$0xff]
    %v361 = vld [vmem:[#allocation5 + $0x6f0] sm:$0xff]
    %v362 = vld [vmem:[#allocation5 + $0x6f8] sm:$0xff]
    %v363 = vld [vmem:[#allocation5 + $0x700] sm:$0xff]
    %v364 = vld [vmem:[#allocation5 + $0x708] sm:$0xff]
    %v365 = vld [vmem:[#allocation5 + $0x710] sm:$0xff]
    %v366 = vld [vmem:[#allocation5 + $0x718] sm:$0xff]
    %v367 = vld [vmem:[#allocation5 + $0x720] sm:$0xff]
    %v368 = vld [vmem:[#allocation5 + $0x728] sm:$0xff]
    %v369 = vld [vmem:[#allocation5 + $0x730] sm:$0xff]
    %v370 = vld [vmem:[#allocation5 + $0x738] sm:$0xff]
    %v371 = vld [vmem:[#allocation5 + $0x740] sm:$0xff]
    %v372 = vld [vmem:[#allocation5 + $0x748] sm:$0xff]
    %v373 = vld [vmem:[#allocation5 + $0x750] sm:$0xff]
    %v374 = vld [vmem:[#allocation5 + $0x758] sm:$0xff]
    %v375 = vld [vmem:[#allocation5 + $0x760] sm:$0xff]
    %v376 = vld [vmem:[#allocation5 + $0x768] sm:$0xff]
    %v377 = vld [vmem:[#allocation5 + $0x770] sm:$0xff]
    %v378 = vld [vmem:[#allocation5 + $0x778] sm:$0xff]
    %v379 = vld [vmem:[#allocation5 + $0x780] sm:$0xff]
    %v380 = vld [vmem:[#allocation5 + $0x788] sm:$0xff]
    %v381 = vld [vmem:[#allocation5 + $0x790] sm:$0xff]
    %v382 = vld [vmem:[#allocation5 + $0x798] sm:$0xff]
    %v383 = vld [vmem:[#allocation5 + $0x7a0] sm:$0xff]
    %v384 = vld [vmem:[#allocation5 + $0x7a8] sm:$0xff]
    %v385 = vld [vmem:[#allocation5 + $0x7b0] sm:$0xff]
    %v386 = vld [vmem:[#allocation5 + $0x7b8] sm:$0xff]
    %v387 = vld [vmem:[#allocation5 + $0x7c0] sm:$0xff]
    %v388 = vld [vmem:[#allocation5 + $0x7c8] sm:$0xff]
    %v389 = vld [vmem:[#allocation5 + $0x7d0] sm:$0xff]
    %v390 = vld [vmem:[#allocation5 + $0x7d8] sm:$0xff]
    %v391 = vld [vmem:[#allocation5 + $0x7e0] sm:$0xff]
    %v392 = vld [vmem:[#allocation5 + $0x7e8] sm:$0xff]
    %v393 = vld [vmem:[#allocation5 + $0x7f0] sm:$0xff]
    %v394 = vld [vmem:[#allocation5 + $0x7f8] sm:$0xff]
    %v395 = vld [vmem:[#allocation5 + $0x800] sm:$0xff]
    %v396 = vld [vmem:[#allocation5 + $0x808] sm:$0xff]
    %v397 = vld [vmem:[#allocation5 + $0x810] sm:$0xff]
    %v398 = vld [vmem:[#allocation5 + $0x818] sm:$0xff]
    %v399 = vld [vmem:[#allocation5 + $0x820] sm:$0xff]
    %v400 = vld [vmem:[#allocation5 + $0x828] sm:$0xff]
    %v401 = vld [vmem:[#allocation5 + $0x830] sm:$0xff]
    %v402 = vld [vmem:[#allocation5 + $0x838] sm:$0xff]
    %v403 = vld [vmem:[#allocation5 + $0x840] sm:$0xff]
    %v404 = vld [vmem:[#allocation5 + $0x848] sm:$0xff]
    %v405 = vld [vmem:[#allocation5 + $0x850] sm:$0xff]
    %v406 = vld [vmem:[#allocation5 + $0x858] sm:$0xff]
    %v407 = vld [vmem:[#allocation5 + $0x860] sm:$0xff]
    %v408 = vld [vmem:[#allocation5 + $0x868] sm:$0xff]
    %v409 = vld [vmem:[#allocation5 + $0x870] sm:$0xff]
    %v410 = vld [vmem:[#allocation5 + $0x878] sm:$0xff]
    %v411 = vld [vmem:[#allocation5 + $0x880] sm:$0xff]
    %v412 = vld [vmem:[#allocation5 + $0x888] sm:$0xff]
    %v413 = vld [vmem:[#allocation5 + $0x890] sm:$0xff]
    %v414 = vld [vmem:[#allocation5 + $0x898] sm:$0xff]
    %v415 = vld [vmem:[#allocation5 + $0x8a0] sm:$0xff]
    %v416 = vld [vmem:[#allocation5 + $0x8a8] sm:$0xff]
    %v417 = vld [vmem:[#allocation5 + $0x8b0] sm:$0xff]
    %v418 = vld [vmem:[#allocation5 + $0x8b8] sm:$0xff]
    %v419 = vld [vmem:[#allocation5 + $0x8c0] sm:$0xff]
    %v420 = vld [vmem:[#allocation5 + $0x8c8] sm:$0xff]
    %v421 = vld [vmem:[#allocation5 + $0x8d0] sm:$0xff]
    %v422 = vld [vmem:[#allocation5 + $0x8d8] sm:$0xff]
    %v423 = vld [vmem:[#allocation5 + $0x8e0] sm:$0xff]
    %v424 = vld [vmem:[#allocation5 + $0x8e8] sm:$0xff]
    %v425 = vld [vmem:[#allocation5 + $0x8f0] sm:$0xff]
    %v426 = vld [vmem:[#allocation5 + $0x8f8] sm:$0xff]
    %v427 = vld [vmem:[#allocation5 + $0x900] sm:$0xff]
    %v428 = vld [vmem:[#allocation5 + $0x908] sm:$0xff]
    %v429 = vld [vmem:[#allocation5 + $0x910] sm:$0xff]
    %v430 = vld [vmem:[#allocation5 + $0x918] sm:$0xff]
    %v431 = vld [vmem:[#allocation5 + $0x920] sm:$0xff]
    %v432 = vld [vmem:[#allocation5 + $0x928] sm:$0xff]
    %v433 = vld [vmem:[#allocation5 + $0x930] sm:$0xff]
    %v434 = vld [vmem:[#allocation5 + $0x938] sm:$0xff]
    %v435 = vld [vmem:[#allocation5 + $0x940] sm:$0xff]
    %v436 = vld [vmem:[#allocation5 + $0x948] sm:$0xff]
    %v437 = vld [vmem:[#allocation5 + $0x950] sm:$0xff]
    %v438 = vld [vmem:[#allocation5 + $0x958] sm:$0xff]
    %v439 = vld [vmem:[#allocation5 + $0x960] sm:$0xff]
    %v440 = vld [vmem:[#allocation5 + $0x968] sm:$0xff]
    %v441 = vld [vmem:[#allocation5 + $0x970] sm:$0xff]
    %v442 = vld [vmem:[#allocation5 + $0x978] sm:$0xff]
    %v443 = vld [vmem:[#allocation5 + $0x980] sm:$0xff]
    %v444 = vld [vmem:[#allocation5 + $0x988] sm:$0xff]
    %v445 = vld [vmem:[#allocation5 + $0x990] sm:$0xff]
    %v446 = vld [vmem:[#allocation5 + $0x998] sm:$0xff]
    %v447 = vld [vmem:[#allocation5 + $0x9a0] sm:$0xff]
    %v448 = vld [vmem:[#allocation5 + $0x9a8] sm:$0xff]
    %v449 = vld [vmem:[#allocation5 + $0x9b0] sm:$0xff]
    %v450 = vld [vmem:[#allocation5 + $0x9b8] sm:$0xff]
    %v451 = vld [vmem:[#allocation5 + $0x9c0] sm:$0xff]
    %v452 = vld [vmem:[#allocation5 + $0x9c8] sm:$0xff]
    %v453 = vld [vmem:[#allocation5 + $0x9d0] sm:$0xff]
    %v454 = vld [vmem:[#allocation5 + $0x9d8] sm:$0xff]
    %v455 = vld [vmem:[#allocation5 + $0x9e0] sm:$0xff]
    %v456 = vld [vmem:[#allocation5 + $0x9e8] sm:$0xff]
    %v457 = vld [vmem:[#allocation5 + $0x9f0] sm:$0xff]
    %v458 = vld [vmem:[#allocation5 + $0x9f8] sm:$0xff]
    %v459 = vld [vmem:[#allocation5 + $0xa00] sm:$0xff]
    %v460 = vld [vmem:[#allocation5 + $0xa08] sm:$0xff]
    %v461 = vld [vmem:[#allocation5 + $0xa10] sm:$0xff]
    %v462 = vld [vmem:[#allocation5 + $0xa18] sm:$0xff]
    %v463 = vld [vmem:[#allocation5 + $0xa20] sm:$0xff]
    %v464 = vld [vmem:[#allocation5 + $0xa28] sm:$0xff]
    %v465 = vld [vmem:[#allocation5 + $0xa30] sm:$0xff]
    %v466 = vld [vmem:[#allocation5 + $0xa38] sm:$0xff]
    %v467 = vld [vmem:[#allocation5 + $0xa40] sm:$0xff]
    %v468 = vld [vmem:[#allocation5 + $0xa48] sm:$0xff]
    %v469 = vld [vmem:[#allocation5 + $0xa50] sm:$0xff]
    %v470 = vld [vmem:[#allocation5 + $0xa58] sm:$0xff]
    %v471 = vld [vmem:[#allocation5 + $0xa60] sm:$0xff]
    %v472 = vld [vmem:[#allocation5 + $0xa68] sm:$0xff]
    %v473 = vld [vmem:[#allocation5 + $0xa70] sm:$0xff]
    %v474 = vld [vmem:[#allocation5 + $0xa78] sm:$0xff]
    %v475 = vld [vmem:[#allocation5 + $0xa80] sm:$0xff]
    %v476 = vld [vmem:[#allocation5 + $0xa88] sm:$0xff]
    %v477 = vld [vmem:[#allocation5 + $0xa90] sm:$0xff]
    %v478 = vld [vmem:[#allocation5 + $0xa98] sm:$0xff]
    %v479 = vld [vmem:[#allocation5 + $0xaa0] sm:$0xff]
    %v480 = vld [vmem:[#allocation5 + $0xaa8] sm:$0xff]
    %v481 = vld [vmem:[#allocation5 + $0xab0] sm:$0xff]
    %v482 = vld [vmem:[#allocation5 + $0xab8] sm:$0xff]
    %v483 = vld [vmem:[#allocation5 + $0xac0] sm:$0xff]
    %v484 = vld [vmem:[#allocation5 + $0xac8] sm:$0xff]
    %v485 = vld [vmem:[#allocation5 + $0xad0] sm:$0xff]
    %v486 = vld [vmem:[#allocation5 + $0xad8] sm:$0xff]
    %v487 = vld [vmem:[#allocation5 + $0xae0] sm:$0xff]
    %v488 = vld [vmem:[#allocation5 + $0xae8] sm:$0xff]
    %v489 = vld [vmem:[#allocation5 + $0xaf0] sm:$0xff]
    %v490 = vld [vmem:[#allocation5 + $0xaf8] sm:$0xff]
    %v491 = vld [vmem:[#allocation5 + $0xb00] sm:$0xff]
    %v492 = vld [vmem:[#allocation5 + $0xb08] sm:$0xff]
    %v493 = vld [vmem:[#allocation5 + $0xb10] sm:$0xff]
    %v494 = vld [vmem:[#allocation5 + $0xb18] sm:$0xff]
    %v495 = vld [vmem:[#allocation5 + $0xb20] sm:$0xff]
    %v496 = vld [vmem:[#allocation5 + $0xb28] sm:$0xff]
    %v497 = vld [vmem:[#allocation5 + $0xb30] sm:$0xff]
    %v498 = vld [vmem:[#allocation5 + $0xb38] sm:$0xff]
    %v499 = vld [vmem:[#allocation5 + $0xb40] sm:$0xff]
    %v500 = vld [vmem:[#allocation5 + $0xb48] sm:$0xff]
    %v501 = vld [vmem:[#allocation5 + $0xb50] sm:$0xff]
    %v502 = vld [vmem:[#allocation5 + $0xb58] sm:$0xff]
    %v503 = vld [vmem:[#allocation5 + $0xb60] sm:$0xff]
    %v504 = vld [vmem:[#allocation5 + $0xb68] sm:$0xff]
    %v505 = vld [vmem:[#allocation5 + $0xb70] sm:$0xff]
    %v506 = vld [vmem:[#allocation5 + $0xb78] sm:$0xff]
    %v507 = vld [vmem:[#allocation5 + $0xb80] sm:$0xff]
    %v508 = vld [vmem:[#allocation5 + $0xb88] sm:$0xff]
    %v509 = vld [vmem:[#allocation5 + $0xb90] sm:$0xff]
    %v510 = vld [vmem:[#allocation5 + $0xb98] sm:$0xff]
    %v511 = vld [vmem:[#allocation5 + $0xba0] sm:$0xff]
    %v512 = vld [vmem:[#allocation5 + $0xba8] sm:$0xff]
    %v513 = vld [vmem:[#allocation5 + $0xbb0] sm:$0xff]
    %v514 = vld [vmem:[#allocation5 + $0xbb8] sm:$0xff]
    %v515 = vld [vmem:[#allocation5 + $0xbc0] sm:$0xff]
    %v516 = vld [vmem:[#allocation5 + $0xbc8] sm:$0xff]
    %v517 = vld [vmem:[#allocation5 + $0xbd0] sm:$0xff]
    %v518 = vld [vmem:[#allocation5 + $0xbd8] sm:$0xff]
    %v519 = vld [vmem:[#allocation5 + $0xbe0] sm:$0xff]
    %v520 = vld [vmem:[#allocation5 + $0xbe8] sm:$0xff]
    %v521 = vld [vmem:[#allocation5 + $0xbf0] sm:$0xff]
    %v522 = vld [vmem:[#allocation5 + $0xbf8] sm:$0xff]
    %v523 = vld [vmem:[#allocation5 + $0xc00] sm:$0xff]
    %v524 = vld [vmem:[#allocation5 + $0xc08] sm:$0xff]
    %v525 = vld [vmem:[#allocation5 + $0xc10] sm:$0xff]
    %v526 = vld [vmem:[#allocation5 + $0xc18] sm:$0xff]
    %v527 = vld [vmem:[#allocation5 + $0xc20] sm:$0xff]
    %v528 = vld [vmem:[#allocation5 + $0xc28] sm:$0xff]
    %v529 = vld [vmem:[#allocation5 + $0xc30] sm:$0xff]
    %v530 = vld [vmem:[#allocation5 + $0xc38] sm:$0xff]
    %v531 = vld [vmem:[#allocation5 + $0xc40] sm:$0xff]
    %v532 = vld [vmem:[#allocation5 + $0xc48] sm:$0xff]
    %v533 = vld [vmem:[#allocation5 + $0xc50] sm:$0xff]
    %v534 = vld [vmem:[#allocation5 + $0xc58] sm:$0xff]
    %v535 = vld [vmem:[#allocation5 + $0xc60] sm:$0xff]
    %v536 = vld [vmem:[#allocation5 + $0xc68] sm:$0xff]
    %v537 = vld [vmem:[#allocation5 + $0xc70] sm:$0xff]
    %v538 = vld [vmem:[#allocation5 + $0xc78] sm:$0xff]
    %v539 = vld [vmem:[#allocation5 + $0xc80] sm:$0xff]
    %v540 = vld [vmem:[#allocation5 + $0xc88] sm:$0xff]
    %v541 = vld [vmem:[#allocation5 + $0xc90] sm:$0xff]
    %v542 = vld [vmem:[#allocation5 + $0xc98] sm:$0xff]
    %v543 = vld [vmem:[#allocation5 + $0xca0] sm:$0xff]
    %v544 = vld [vmem:[#allocation5 + $0xca8] sm:$0xff]
    %v545 = vld [vmem:[#allocation5 + $0xcb0] sm:$0xff]
    %v546 = vld [vmem:[#allocation5 + $0xcb8] sm:$0xff]
    %v547 = vld [vmem:[#allocation5 + $0xcc0] sm:$0xff]
    %v548 = vld [vmem:[#allocation5 + $0xcc8] sm:$0xff]
    %v549 = vld [vmem:[#allocation5 + $0xcd0] sm:$0xff]
    %v550 = vld [vmem:[#allocation5 + $0xcd8] sm:$0xff]
    %v551 = vld [vmem:[#allocation5 + $0xce0] sm:$0xff]
    %v552 = vld [vmem:[#allocation5 + $0xce8] sm:$0xff]
    %v553 = vld [vmem:[#allocation5 + $0xcf0] sm:$0xff]
    %v554 = vld [vmem:[#allocation5 + $0xcf8] sm:$0xff]
    %v555 = vld [vmem:[#allocation5 + $0xd00] sm:$0xff]
    %v556 = vld [vmem:[#allocation5 + $0xd08] sm:$0xff]
    %v557 = vld [vmem:[#allocation5 + $0xd10] sm:$0xff]
    %v558 = vld [vmem:[#allocation5 + $0xd18] sm:$0xff]
    %v559 = vld [vmem:[#allocation5 + $0xd20] sm:$0xff]
    %v560 = vld [vmem:[#allocation5 + $0xd28] sm:$0xff]
    %v561 = vld [vmem:[#allocation5 + $0xd30] sm:$0xff]
    %v562 = vld [vmem:[#allocation5 + $0xd38] sm:$0xff]
    %v563 = vld [vmem:[#allocation5 + $0xd40] sm:$0xff]
    %v564 = vld [vmem:[#allocation5 + $0xd48] sm:$0xff]
    %v565 = vld [vmem:[#allocation5 + $0xd50] sm:$0xff]
    %v566 = vld [vmem:[#allocation5 + $0xd58] sm:$0xff]
    %v567 = vld [vmem:[#allocation5 + $0xd60] sm:$0xff]
    %v568 = vld [vmem:[#allocation5 + $0xd68] sm:$0xff]
    %v569 = vld [vmem:[#allocation5 + $0xd70] sm:$0xff]
    %v570 = vld [vmem:[#allocation5 + $0xd78] sm:$0xff]
    %v571 = vld [vmem:[#allocation5 + $0xd80] sm:$0xff]
    %v572 = vld [vmem:[#allocation5 + $0xd88] sm:$0xff]
    %v573 = vld [vmem:[#allocation5 + $0xd90] sm:$0xff]
    %v574 = vld [vmem:[#allocation5 + $0xd98] sm:$0xff]
    %v575 = vld [vmem:[#allocation5 + $0xda0] sm:$0xff]
    %v576 = vld [vmem:[#allocation5 + $0xda8] sm:$0xff]
    %v577 = vld [vmem:[#allocation5 + $0xdb0] sm:$0xff]
    %v578 = vld [vmem:[#allocation5 + $0xdb8] sm:$0xff]
    %v579 = vld [vmem:[#allocation5 + $0xdc0] sm:$0xff]
    %v580 = vld [vmem:[#allocation5 + $0xdc8] sm:$0xff]
    %v581 = vld [vmem:[#allocation5 + $0xdd0] sm:$0xff]
    %v582 = vld [vmem:[#allocation5 + $0xdd8] sm:$0xff]
    %v583 = vld [vmem:[#allocation5 + $0xde0] sm:$0xff]
    %v584 = vld [vmem:[#allocation5 + $0xde8] sm:$0xff]
    %v585 = vld [vmem:[#allocation5 + $0xdf0] sm:$0xff]
    %v586 = vld [vmem:[#allocation5 + $0xdf8] sm:$0xff]
    %v587 = vld [vmem:[#allocation5 + $0xe00] sm:$0xff]
    %v588 = vld [vmem:[#allocation5 + $0xe08] sm:$0xff]
    %v589 = vld [vmem:[#allocation5 + $0xe10] sm:$0xff]
    %v590 = vld [vmem:[#allocation5 + $0xe18] sm:$0xff]
    %v591 = vld [vmem:[#allocation5 + $0xe20] sm:$0xff]
    %v592 = vld [vmem:[#allocation5 + $0xe28] sm:$0xff]
    %v593 = vld [vmem:[#allocation5 + $0xe30] sm:$0xff]
    %v594 = vld [vmem:[#allocation5 + $0xe38] sm:$0xff]
    %v595 = vld [vmem:[#allocation5 + $0xe40] sm:$0xff]
    %v596 = vld [vmem:[#allocation5 + $0xe48] sm:$0xff]
    %v597 = vld [vmem:[#allocation5 + $0xe50] sm:$0xff]
    %v598 = vld [vmem:[#allocation5 + $0xe58] sm:$0xff]
    %v599 = vld [vmem:[#allocation5 + $0xe60] sm:$0xff]
    %v600 = vld [vmem:[#allocation5 + $0xe68] sm:$0xff]
    %v601 = vld [vmem:[#allocation5 + $0xe70] sm:$0xff]
    %v602 = vld [vmem:[#allocation5 + $0xe78] sm:$0xff]
    %v603 = vld [vmem:[#allocation5 + $0xe80] sm:$0xff]
    %v604 = vld [vmem:[#allocation5 + $0xe88] sm:$0xff]
    %v605 = vld [vmem:[#allocation5 + $0xe90] sm:$0xff]
    %v606 = vld [vmem:[#allocation5 + $0xe98] sm:$0xff]
    %v607 = vld [vmem:[#allocation5 + $0xea0] sm:$0xff]
    %v608 = vld [vmem:[#allocation5 + $0xea8] sm:$0xff]
    %v609 = vld [vmem:[#allocation5 + $0xeb0] sm:$0xff]
    %v610 = vld [vmem:[#allocation5 + $0xeb8] sm:$0xff]
    %v611 = vld [vmem:[#allocation5 + $0xec0] sm:$0xff]
    %v612 = vld [vmem:[#allocation5 + $0xec8] sm:$0xff]
    %v613 = vld [vmem:[#allocation5 + $0xed0] sm:$0xff]
    %v614 = vld [vmem:[#allocation5 + $0xed8] sm:$0xff]
    %v615 = vld [vmem:[#allocation5 + $0xee0] sm:$0xff]
    %v616 = vld [vmem:[#allocation5 + $0xee8] sm:$0xff]
    %v617 = vld [vmem:[#allocation5 + $0xef0] sm:$0xff]
    %v618 = vld [vmem:[#allocation5 + $0xef8] sm:$0xff]
    %v619 = vld [vmem:[#allocation5 + $0xf00] sm:$0xff]
    %v620 = vld [vmem:[#allocation5 + $0xf08] sm:$0xff]
    %v621 = vld [vmem:[#allocation5 + $0xf10] sm:$0xff]
    %v622 = vld [vmem:[#allocation5 + $0xf18] sm:$0xff]
    %v623 = vld [vmem:[#allocation5 + $0xf20] sm:$0xff]
    %v624 = vld [vmem:[#allocation5 + $0xf28] sm:$0xff]
    %v625 = vld [vmem:[#allocation5 + $0xf30] sm:$0xff]
    %v626 = vld [vmem:[#allocation5 + $0xf38] sm:$0xff]
    %v627 = vld [vmem:[#allocation5 + $0xf40] sm:$0xff]
    %v628 = vld [vmem:[#allocation5 + $0xf48] sm:$0xff]
    %v629 = vld [vmem:[#allocation5 + $0xf50] sm:$0xff]
    %v630 = vld [vmem:[#allocation5 + $0xf58] sm:$0xff]
    %v631 = vld [vmem:[#allocation5 + $0xf60] sm:$0xff]
    %v632 = vld [vmem:[#allocation5 + $0xf68] sm:$0xff]
    %v633 = vld [vmem:[#allocation5 + $0xf70] sm:$0xff]
    %v634 = vld [vmem:[#allocation5 + $0xf78] sm:$0xff]
    %v635 = vld [vmem:[#allocation5 + $0xf80] sm:$0xff]
    %v636 = vld [vmem:[#allocation5 + $0xf88] sm:$0xff]
    %v637 = vld [vmem:[#allocation5 + $0xf90] sm:$0xff]
    %v638 = vld [vmem:[#allocation5 + $0xf98] sm:$0xff]
    %v639 = vld [vmem:[#allocation5 + $0xfa0] sm:$0xff]
    %v640 = vld [vmem:[#allocation5 + $0xfa8] sm:$0xff]
    %v641 = vld [vmem:[#allocation5 + $0xfb0] sm:$0xff]
    %v642 = vld [vmem:[#allocation5 + $0xfb8] sm:$0xff]
    %v643 = vld [vmem:[#allocation5 + $0xfc0] sm:$0xff]
    %v644 = vld [vmem:[#allocation5 + $0xfc8] sm:$0xff]
    %v645 = vld [vmem:[#allocation5 + $0xfd0] sm:$0xff]
    %v646 = vld [vmem:[#allocation5 + $0xfd8] sm:$0xff]
    %v647 = vld [vmem:[#allocation5 + $0xfe0] sm:$0xff]
    %v648 = vld [vmem:[#allocation5 + $0xfe8] sm:$0xff]
    %v649 = vld [vmem:[#allocation5 + $0xff0] sm:$0xff]
    %v650 = vld [vmem:[#allocation5 + $0xff8] sm:$0xff]
    %v651 = vld [vmem:[#allocation7] sm:$0x3f]
    %v652 = vld [vmem:[#allocation7 + $0x8] sm:$0x3f]
    %v653 = vld [vmem:[#allocation7 + $0x10] sm:$0x3f]
    %v654 = vld [vmem:[#allocation7 + $0x18] sm:$0x3f]
    %vm655 = vcmask 48128
    %v657 = vsel %vm655, %v137, 0
    %v660 = vsel %vm655, %v138, 0
    %vm662 = vcmask 1045504
    %v664 = vsel %vm662, %v651, 0
    %v667 = vsel %vm662, %v652, 0
    %v670 = vsel %vm662, %v653, 0
    %v673 = vsel %vm662, %v654, 0
    %675 = vmatprep.subr.mxu0 0.0
    %676 = vmatpush1.msra.mxu0 0.0
    %677 = vmatprep.subr.mxu0 0.0
    %678 = vmatpush1.msra.mxu0 0.0
    %679 = vmatprep.subr.mxu0 0.0
    %680 = vmatpush1.msra.mxu0 0.0
    %681 = vmatprep.subr.mxu0 0.0
    %682 = vmatpush1.msra.mxu0 0.0
    %683 = vmatprep.subr.mxu0 0.0
    %684 = vmatpush1.msra.mxu0 0.0
    %685 = vmatprep.subr.mxu0 0.0
    %686 = vmatpush1.msra.mxu0 0.0
    %687 = vmatprep.subr.mxu0 0.0
    %688 = vmatpush1.msra.mxu0 0.0
    %689 = vmatprep.subr.mxu0 0.0
    %690 = vmatpush1.msra.mxu0 0.0
    %691 = vmatprep.subr.mxu0 0.0
    %692 = vmatpush1.msra.mxu0 0.0
    %693 = vmatprep.subr.mxu0 0.0
    %694 = vmatpush1.msra.mxu0 0.0
    %695 = vmatprep.subr.mxu0 0.0
    %696 = vmatpush1.msra.mxu0 0.0
    %697 = vmatprep.subr.mxu0 0.0
    %698 = vmatpush1.msra.mxu0 0.0
    %699 = vmatprep.subr.mxu0 0.0
    %700 = vmatpush1.msra.mxu0 0.0
    %701 = vmatprep.subr.mxu0 0.0
    %702 = vmatpush1.msra.mxu0 0.0
    %703 = vmatprep.subr.mxu0 0.0
    %704 = vmatpush1.msra.mxu0 0.0
    %705 = vmatprep.subr.mxu0 %v667
    %706 = vmatpush1.msra.mxu0 %v664
    %707 = vmatprep.subr.mxu0 0.0
    %708 = vmatpush2.msra.mxu0 0.0
    %709 = vmatprep.subr.mxu0 0.0
    %710 = vmatpush2.msra.mxu0 0.0
    %711 = vmatprep.subr.mxu0 0.0
    %712 = vmatpush2.msra.mxu0 0.0
    %713 = vmatprep.subr.mxu0 0.0
    %714 = vmatpush2.msra.mxu0 0.0
    %715 = vmatprep.subr.mxu0 0.0
    %716 = vmatpush2.msra.mxu0 0.0
    %717 = vmatprep.subr.mxu0 0.0
    %718 = vmatpush2.msra.mxu0 0.0
    %719 = vmatprep.subr.mxu0 0.0
    %720 = vmatpush2.msra.mxu0 0.0
    %721 = vmatprep.subr.mxu0 0.0
    %722 = vmatpush2.msra.mxu0 0.0
    %723 = vmatprep.subr.mxu0 0.0
    %724 = vmatpush2.msra.mxu0 0.0
    %725 = vmatprep.subr.mxu0 0.0
    %726 = vmatpush2.msra.mxu0 0.0
    %727 = vmatprep.subr.mxu0 0.0
    %728 = vmatpush2.msra.mxu0 0.0
    %729 = vmatprep.subr.mxu0 0.0
    %730 = vmatpush2.msra.mxu0 0.0
    %731 = vmatprep.subr.mxu0 0.0
    %732 = vmatpush2.msra.mxu0 0.0
    %733 = vmatprep.subr.mxu0 0.0
    %734 = vmatpush2.msra.mxu0 0.0
    %735 = vmatprep.subr.mxu0 0.0
    %736 = vmatpush2.msra.mxu0 0.0
    %737 = vmatprep.subr.mxu0 0.0
    %738 = vmatpush2.msra.mxu0 0.0
    %739 = vmatprep.mubr.f32.mxu0 0.0
    %740 = vmatmul.mubr.f32.gmra.mxu0 %v657
    %v741 = vpop.f32.mrf.mxu0
    %v742 = vadd.f32 0.0, %v741
    %v743 = vpop.f32.mrf.mxu0
    %v744 = vadd.f32 0.0, %v743
    %745 = vmatprep.mubr.f32.mxu0 0.0
    %746 = vmatmul.mubr.f32.gmra.mxu0 %v660
    %v747 = vpop.f32.mrf.mxu0
    %v748 = vadd.f32 0.0, %v747
    %v749 = vpop.f32.mrf.mxu0
    %v750 = vadd.f32 0.0, %v749
    %751 = vdwg.mxu0
    %752 = vmatprep.subr.mxu0 0.0
    %753 = vmatpush1.msra.mxu0 0.0
    %754 = vmatprep.subr.mxu0 0.0
    %755 = vmatpush1.msra.mxu0 0.0
    %756 = vmatprep.subr.mxu0 0.0
    %757 = vmatpush1.msra.mxu0 0.0
    %758 = vmatprep.subr.mxu0 0.0
    %759 = vmatpush1.msra.mxu0 0.0
    %760 = vmatprep.subr.mxu0 0.0
    %761 = vmatpush1.msra.mxu0 0.0
    %762 = vmatprep.subr.mxu0 0.0
    %763 = vmatpush1.msra.mxu0 0.0
    %764 = vmatprep.subr.mxu0 0.0
    %765 = vmatpush1.msra.mxu0 0.0
    %766 = vmatprep.subr.mxu0 0.0
    %767 = vmatpush1.msra.mxu0 0.0
    %768 = vmatprep.subr.mxu0 0.0
    %769 = vmatpush1.msra.mxu0 0.0
    %770 = vmatprep.subr.mxu0 0.0
    %771 = vmatpush1.msra.mxu0 0.0
    %772 = vmatprep.subr.mxu0 0.0
    %773 = vmatpush1.msra.mxu0 0.0
    %774 = vmatprep.subr.mxu0 0.0
    %775 = vmatpush1.msra.mxu0 0.0
    %776 = vmatprep.subr.mxu0 0.0
    %777 = vmatpush1.msra.mxu0 0.0
    %778 = vmatprep.subr.mxu0 0.0
    %779 = vmatpush1.msra.mxu0 0.0
    %780 = vmatprep.subr.mxu0 0.0
    %781 = vmatpush1.msra.mxu0 0.0
    %782 = vmatprep.subr.mxu0 %v673
    %783 = vmatpush1.msra.mxu0 %v670
    %784 = vmatprep.subr.mxu0 0.0
    %785 = vmatpush2.msra.mxu0 0.0
    %786 = vmatprep.subr.mxu0 0.0
    %787 = vmatpush2.msra.mxu0 0.0
    %788 = vmatprep.subr.mxu0 0.0
    %789 = vmatpush2.msra.mxu0 0.0
    %790 = vmatprep.subr.mxu0 0.0
    %791 = vmatpush2.msra.mxu0 0.0
    %792 = vmatprep.subr.mxu0 0.0
    %793 = vmatpush2.msra.mxu0 0.0
    %794 = vmatprep.subr.mxu0 0.0
    %795 = vmatpush2.msra.mxu0 0.0
    %796 = vmatprep.subr.mxu0 0.0
    %797 = vmatpush2.msra.mxu0 0.0
    %798 = vmatprep.subr.mxu0 0.0
    %799 = vmatpush2.msra.mxu0 0.0
    %800 = vmatprep.subr.mxu0 0.0
    %801 = vmatpush2.msra.mxu0 0.0
    %802 = vmatprep.subr.mxu0 0.0
    %803 = vmatpush2.msra.mxu0 0.0
    %804 = vmatprep.subr.mxu0 0.0
    %805 = vmatpush2.msra.mxu0 0.0
    %806 = vmatprep.subr.mxu0 0.0
    %807 = vmatpush2.msra.mxu0 0.0
    %808 = vmatprep.subr.mxu0 0.0
    %809 = vmatpush2.msra.mxu0 0.0
    %810 = vmatprep.subr.mxu0 0.0
    %811 = vmatpush2.msra.mxu0 0.0
    %812 = vmatprep.subr.mxu0 0.0
    %813 = vmatpush2.msra.mxu0 0.0
    %814 = vmatprep.subr.mxu0 0.0
    %815 = vmatpush2.msra.mxu0 0.0
    %816 = vmatprep.mubr.f32.mxu0 0.0
    %817 = vmatmul.mubr.f32.gmra.mxu0 %v657
    %v818 = vpop.f32.mrf.mxu0
    %v819 = vadd.f32 0.0, %v818
    %v820 = vpop.f32.mrf.mxu0
    %v821 = vadd.f32 0.0, %v820
    %822 = vmatprep.mubr.f32.mxu0 0.0
    %823 = vmatmul.mubr.f32.gmra.mxu0 %v660
    %v824 = vpop.f32.mrf.mxu0
    %v825 = vadd.f32 0.0, %v824
    %v826 = vpop.f32.mrf.mxu0
    %v827 = vadd.f32 0.0, %v826
    %828 = vdwg.mxu0
    %829 = vmatprep.subr.mxu0 %v200
    %830 = vmatpush1.msra.mxu0 %v199
    %831 = vmatprep.subr.mxu0 %v196
    %832 = vmatpush1.msra.mxu0 %v195
    %833 = vmatprep.subr.mxu0 %v192
    %834 = vmatpush1.msra.mxu0 %v191
    %835 = vmatprep.subr.mxu0 %v188
    %836 = vmatpush1.msra.mxu0 %v187
    %837 = vmatprep.subr.mxu0 %v184
    %838 = vmatpush1.msra.mxu0 %v183
    %839 = vmatprep.subr.mxu0 %v180
    %840 = vmatpush1.msra.mxu0 %v179
    %841 = vmatprep.subr.mxu0 %v176
    %842 = vmatpush1.msra.mxu0 %v175
    %843 = vmatprep.subr.mxu0 %v172
    %844 = vmatpush1.msra.mxu0 %v171
    %845 = vmatprep.subr.mxu0 %v168
    %846 = vmatpush1.msra.mxu0 %v167
    %847 = vmatprep.subr.mxu0 %v164
    %848 = vmatpush1.msra.mxu0 %v163
    %849 = vmatprep.subr.mxu0 %v160
    %850 = vmatpush1.msra.mxu0 %v159
    %851 = vmatprep.subr.mxu0 %v156
    %852 = vmatpush1.msra.mxu0 %v155
    %853 = vmatprep.subr.mxu0 %v152
    %854 = vmatpush1.msra.mxu0 %v151
    %855 = vmatprep.subr.mxu0 %v148
    %856 = vmatpush1.msra.mxu0 %v147
    %857 = vmatprep.subr.mxu0 %v144
    %858 = vmatpush1.msra.mxu0 %v143
    %859 = vmatprep.subr.mxu0 %v140
    %860 = vmatpush1.msra.mxu0 %v139
    %861 = vmatprep.subr.mxu0 %v264
    %862 = vmatpush2.msra.mxu0 %v263
    %863 = vmatprep.subr.mxu0 %v260
    %864 = vmatpush2.msra.mxu0 %v259
    %865 = vmatprep.subr.mxu0 %v256
    %866 = vmatpush2.msra.mxu0 %v255
    %867 = vmatprep.subr.mxu0 %v252
    %868 = vmatpush2.msra.mxu0 %v251
    %869 = vmatprep.subr.mxu0 %v248
    %870 = vmatpush2.msra.mxu0 %v247
    %871 = vmatprep.subr.mxu0 %v244
    %872 = vmatpush2.msra.mxu0 %v243
    %873 = vmatprep.subr.mxu0 %v240
    %874 = vmatpush2.msra.mxu0 %v239
    %875 = vmatprep.subr.mxu0 %v236
    %876 = vmatpush2.msra.mxu0 %v235
    %877 = vmatprep.subr.mxu0 %v232
    %878 = vmatpush2.msra.mxu0 %v231
    %879 = vmatprep.subr.mxu0 %v228
    %880 = vmatpush2.msra.mxu0 %v227
    %881 = vmatprep.subr.mxu0 %v224
    %882 = vmatpush2.msra.mxu0 %v223
    %883 = vmatprep.subr.mxu0 %v220
    %884 = vmatpush2.msra.mxu0 %v219
    %885 = vmatprep.subr.mxu0 %v216
    %886 = vmatpush2.msra.mxu0 %v215
    %887 = vmatprep.subr.mxu0 %v212
    %888 = vmatpush2.msra.mxu0 %v211
    %889 = vmatprep.subr.mxu0 %v208
    %890 = vmatpush2.msra.mxu0 %v207
    %891 = vmatprep.subr.mxu0 %v204
    %892 = vmatpush2.msra.mxu0 %v203
    %893 = vmatprep.mubr.f32.mxu0 %v122
    %894 = vmatmul.mubr.f32.gmra.mxu0 %v121
    %v895 = vpop.f32.mrf.mxu0
    %v896 = vadd.f32 %v742, %v895
    %v897 = vpop.f32.mrf.mxu0
    %v898 = vadd.f32 %v744, %v897
    %899 = vmatprep.mubr.f32.mxu0 %v130
    %900 = vmatmul.mubr.f32.gmra.mxu0 %v129
    %v901 = vpop.f32.mrf.mxu0
    %v902 = vadd.f32 %v748, %v901
    %v903 = vpop.f32.mrf.mxu0
    %v904 = vadd.f32 %v750, %v903
    %905 = vdwg.mxu0
    %906 = vmatprep.subr.mxu0 %v328
    %907 = vmatpush1.msra.mxu0 %v327
    %908 = vmatprep.subr.mxu0 %v324
    %909 = vmatpush1.msra.mxu0 %v323
    %910 = vmatprep.subr.mxu0 %v320
    %911 = vmatpush1.msra.mxu0 %v319
    %912 = vmatprep.subr.mxu0 %v316
    %913 = vmatpush1.msra.mxu0 %v315
    %914 = vmatprep.subr.mxu0 %v312
    %915 = vmatpush1.msra.mxu0 %v311
    %916 = vmatprep.subr.mxu0 %v308
    %917 = vmatpush1.msra.mxu0 %v307
    %918 = vmatprep.subr.mxu0 %v304
    %919 = vmatpush1.msra.mxu0 %v303
    %920 = vmatprep.subr.mxu0 %v300
    %921 = vmatpush1.msra.mxu0 %v299
    %922 = vmatprep.subr.mxu0 %v296
    %923 = vmatpush1.msra.mxu0 %v295
    %924 = vmatprep.subr.mxu0 %v292
    %925 = vmatpush1.msra.mxu0 %v291
    %926 = vmatprep.subr.mxu0 %v288
    %927 = vmatpush1.msra.mxu0 %v287
    %928 = vmatprep.subr.mxu0 %v284
    %929 = vmatpush1.msra.mxu0 %v283
    %930 = vmatprep.subr.mxu0 %v280
    %931 = vmatpush1.msra.mxu0 %v279
    %932 = vmatprep.subr.mxu0 %v276
    %933 = vmatpush1.msra.mxu0 %v275
    %934 = vmatprep.subr.mxu0 %v272
    %935 = vmatpush1.msra.mxu0 %v271
    %936 = vmatprep.subr.mxu0 %v268
    %937 = vmatpush1.msra.mxu0 %v267
    %938 = vmatprep.subr.mxu0 %v392
    %939 = vmatpush2.msra.mxu0 %v391
    %940 = vmatprep.subr.mxu0 %v388
    %941 = vmatpush2.msra.mxu0 %v387
    %942 = vmatprep.subr.mxu0 %v384
    %943 = vmatpush2.msra.mxu0 %v383
    %944 = vmatprep.subr.mxu0 %v380
    %945 = vmatpush2.msra.mxu0 %v379
    %946 = vmatprep.subr.mxu0 %v376
    %947 = vmatpush2.msra.mxu0 %v375
    %948 = vmatprep.subr.mxu0 %v372
    %949 = vmatpush2.msra.mxu0 %v371
    %950 = vmatprep.subr.mxu0 %v368
    %951 = vmatpush2.msra.mxu0 %v367
    %952 = vmatprep.subr.mxu0 %v364
    %953 = vmatpush2.msra.mxu0 %v363
    %954 = vmatprep.subr.mxu0 %v360
    %955 = vmatpush2.msra.mxu0 %v359
    %956 = vmatprep.subr.mxu0 %v356
    %957 = vmatpush2.msra.mxu0 %v355
    %958 = vmatprep.subr.mxu0 %v352
    %959 = vmatpush2.msra.mxu0 %v351
    %960 = vmatprep.subr.mxu0 %v348
    %961 = vmatpush2.msra.mxu0 %v347
    %962 = vmatprep.subr.mxu0 %v344
    %963 = vmatpush2.msra.mxu0 %v343
    %964 = vmatprep.subr.mxu0 %v340
    %965 = vmatpush2.msra.mxu0 %v339
    %966 = vmatprep.subr.mxu0 %v336
    %967 = vmatpush2.msra.mxu0 %v335
    %968 = vmatprep.subr.mxu0 %v332
    %969 = vmatpush2.msra.mxu0 %v331
    %970 = vmatprep.mubr.f32.mxu0 %v124
    %971 = vmatmul.mubr.f32.gmra.mxu0 %v123
    %v972 = vpop.f32.mrf.mxu0
    %v973 = vadd.f32 %v896, %v972
    %v974 = vpop.f32.mrf.mxu0
    %v975 = vadd.f32 %v898, %v974
    %976 = vmatprep.mubr.f32.mxu0 %v132
    %977 = vmatmul.mubr.f32.gmra.mxu0 %v131
    %v978 = vpop.f32.mrf.mxu0
    %v979 = vadd.f32 %v902, %v978
    %v980 = vpop.f32.mrf.mxu0
    %v981 = vadd.f32 %v904, %v980
    %982 = vdwg.mxu0
    %983 = vmatprep.subr.mxu0 %v456
    %984 = vmatpush1.msra.mxu0 %v455
    %985 = vmatprep.subr.mxu0 %v452
    %986 = vmatpush1.msra.mxu0 %v451
    %987 = vmatprep.subr.mxu0 %v448
    %988 = vmatpush1.msra.mxu0 %v447
    %989 = vmatprep.subr.mxu0 %v444
    %990 = vmatpush1.msra.mxu0 %v443
    %991 = vmatprep.subr.mxu0 %v440
    %992 = vmatpush1.msra.mxu0 %v439
    %993 = vmatprep.subr.mxu0 %v436
    %994 = vmatpush1.msra.mxu0 %v435
    %995 = vmatprep.subr.mxu0 %v432
    %996 = vmatpush1.msra.mxu0 %v431
    %997 = vmatprep.subr.mxu0 %v428
    %998 = vmatpush1.msra.mxu0 %v427
    %999 = vmatprep.subr.mxu0 %v424
    %1000 = vmatpush1.msra.mxu0 %v423
    %1001 = vmatprep.subr.mxu0 %v420
    %1002 = vmatpush1.msra.mxu0 %v419
    %1003 = vmatprep.subr.mxu0 %v416
    %1004 = vmatpush1.msra.mxu0 %v415
    %1005 = vmatprep.subr.mxu0 %v412
    %1006 = vmatpush1.msra.mxu0 %v411
    %1007 = vmatprep.subr.mxu0 %v408
    %1008 = vmatpush1.msra.mxu0 %v407
    %1009 = vmatprep.subr.mxu0 %v404
    %1010 = vmatpush1.msra.mxu0 %v403
    %1011 = vmatprep.subr.mxu0 %v400
    %1012 = vmatpush1.msra.mxu0 %v399
    %1013 = vmatprep.subr.mxu0 %v396
    %1014 = vmatpush1.msra.mxu0 %v395
    %1015 = vmatprep.subr.mxu0 %v520
    %1016 = vmatpush2.msra.mxu0 %v519
    %1017 = vmatprep.subr.mxu0 %v516
    %1018 = vmatpush2.msra.mxu0 %v515
    %1019 = vmatprep.subr.mxu0 %v512
    %1020 = vmatpush2.msra.mxu0 %v511
    %1021 = vmatprep.subr.mxu0 %v508
    %1022 = vmatpush2.msra.mxu0 %v507
    %1023 = vmatprep.subr.mxu0 %v504
    %1024 = vmatpush2.msra.mxu0 %v503
    %1025 = vmatprep.subr.mxu0 %v500
    %1026 = vmatpush2.msra.mxu0 %v499
    %1027 = vmatprep.subr.mxu0 %v496
    %1028 = vmatpush2.msra.mxu0 %v495
    %1029 = vmatprep.subr.mxu0 %v492
    %1030 = vmatpush2.msra.mxu0 %v491
    %1031 = vmatprep.subr.mxu0 %v488
    %1032 = vmatpush2.msra.mxu0 %v487
    %1033 = vmatprep.subr.mxu0 %v484
    %1034 = vmatpush2.msra.mxu0 %v483
    %1035 = vmatprep.subr.mxu0 %v480
    %1036 = vmatpush2.msra.mxu0 %v479
    %1037 = vmatprep.subr.mxu0 %v476
    %1038 = vmatpush2.msra.mxu0 %v475
    %1039 = vmatprep.subr.mxu0 %v472
    %1040 = vmatpush2.msra.mxu0 %v471
    %1041 = vmatprep.subr.mxu0 %v468
    %1042 = vmatpush2.msra.mxu0 %v467
    %1043 = vmatprep.subr.mxu0 %v464
    %1044 = vmatpush2.msra.mxu0 %v463
    %1045 = vmatprep.subr.mxu0 %v460
    %1046 = vmatpush2.msra.mxu0 %v459
    %1047 = vmatprep.mubr.f32.mxu0 %v126
    %1048 = vmatmul.mubr.f32.gmra.mxu0 %v125
    %v1049 = vpop.f32.mrf.mxu0
    %v1050 = vadd.f32 %v973, %v1049
    %v1051 = vpop.f32.mrf.mxu0
    %v1052 = vadd.f32 %v975, %v1051
    %1053 = vmatprep.mubr.f32.mxu0 %v134
    %1054 = vmatmul.mubr.f32.gmra.mxu0 %v133
    %v1055 = vpop.f32.mrf.mxu0
    %v1056 = vadd.f32 %v979, %v1055
    %v1057 = vpop.f32.mrf.mxu0
    %v1058 = vadd.f32 %v981, %v1057
    %1059 = vdwg.mxu0
    %1060 = vmatprep.subr.mxu0 %v584
    %1061 = vmatpush1.msra.mxu0 %v583
    %1062 = vmatprep.subr.mxu0 %v580
    %1063 = vmatpush1.msra.mxu0 %v579
    %1064 = vmatprep.subr.mxu0 %v576
    %1065 = vmatpush1.msra.mxu0 %v575
    %1066 = vmatprep.subr.mxu0 %v572
    %1067 = vmatpush1.msra.mxu0 %v571
    %1068 = vmatprep.subr.mxu0 %v568
    %1069 = vmatpush1.msra.mxu0 %v567
    %1070 = vmatprep.subr.mxu0 %v564
    %1071 = vmatpush1.msra.mxu0 %v563
    %1072 = vmatprep.subr.mxu0 %v560
    %1073 = vmatpush1.msra.mxu0 %v559
    %1074 = vmatprep.subr.mxu0 %v556
    %1075 = vmatpush1.msra.mxu0 %v555
    %1076 = vmatprep.subr.mxu0 %v552
    %1077 = vmatpush1.msra.mxu0 %v551
    %1078 = vmatprep.subr.mxu0 %v548
    %1079 = vmatpush1.msra.mxu0 %v547
    %1080 = vmatprep.subr.mxu0 %v544
    %1081 = vmatpush1.msra.mxu0 %v543
    %1082 = vmatprep.subr.mxu0 %v540
    %1083 = vmatpush1.msra.mxu0 %v539
    %1084 = vmatprep.subr.mxu0 %v536
    %1085 = vmatpush1.msra.mxu0 %v535
    %1086 = vmatprep.subr.mxu0 %v532
    %1087 = vmatpush1.msra.mxu0 %v531
    %1088 = vmatprep.subr.mxu0 %v528
    %1089 = vmatpush1.msra.mxu0 %v527
    %1090 = vmatprep.subr.mxu0 %v524
    %1091 = vmatpush1.msra.mxu0 %v523
    %1092 = vmatprep.subr.mxu0 %v648
    %1093 = vmatpush2.msra.mxu0 %v647
    %1094 = vmatprep.subr.mxu0 %v644
    %1095 = vmatpush2.msra.mxu0 %v643
    %1096 = vmatprep.subr.mxu0 %v640
    %1097 = vmatpush2.msra.mxu0 %v639
    %1098 = vmatprep.subr.mxu0 %v636
    %1099 = vmatpush2.msra.mxu0 %v635
    %1100 = vmatprep.subr.mxu0 %v632
    %1101 = vmatpush2.msra.mxu0 %v631
    %1102 = vmatprep.subr.mxu0 %v628
    %1103 = vmatpush2.msra.mxu0 %v627
    %1104 = vmatprep.subr.mxu0 %v624
    %1105 = vmatpush2.msra.mxu0 %v623
    %1106 = vmatprep.subr.mxu0 %v620
    %1107 = vmatpush2.msra.mxu0 %v619
    %1108 = vmatprep.subr.mxu0 %v616
    %1109 = vmatpush2.msra.mxu0 %v615
    %1110 = vmatprep.subr.mxu0 %v612
    %1111 = vmatpush2.msra.mxu0 %v611
    %1112 = vmatprep.subr.mxu0 %v608
    %1113 = vmatpush2.msra.mxu0 %v607
    %1114 = vmatprep.subr.mxu0 %v604
    %1115 = vmatpush2.msra.mxu0 %v603
    %1116 = vmatprep.subr.mxu0 %v600
    %1117 = vmatpush2.msra.mxu0 %v599
    %1118 = vmatprep.subr.mxu0 %v596
    %1119 = vmatpush2.msra.mxu0 %v595
    %1120 = vmatprep.subr.mxu0 %v592
    %1121 = vmatpush2.msra.mxu0 %v591
    %1122 = vmatprep.subr.mxu0 %v588
    %1123 = vmatpush2.msra.mxu0 %v587
    %1124 = vmatprep.mubr.f32.mxu0 %v128
    %1125 = vmatmul.mubr.f32.gmra.mxu0 %v127
    %v1126 = vpop.f32.mrf.mxu0
    %v1127 = vadd.f32 %v1050, %v1126
    %v1128 = vpop.f32.mrf.mxu0
    %v1129 = vadd.f32 %v1052, %v1128
    %1130 = vmatprep.mubr.f32.mxu0 %v136
    %1131 = vmatmul.mubr.f32.gmra.mxu0 %v135
    %v1132 = vpop.f32.mrf.mxu0
    %v1133 = vadd.f32 %v1056, %v1132
    %v1134 = vpop.f32.mrf.mxu0
    %v1135 = vadd.f32 %v1058, %v1134
    %1136 = vdwg.mxu0
    %1137 = vmatprep.subr.mxu0 %v202
    %1138 = vmatpush1.msra.mxu0 %v201
    %1139 = vmatprep.subr.mxu0 %v198
    %1140 = vmatpush1.msra.mxu0 %v197
    %1141 = vmatprep.subr.mxu0 %v194
    %1142 = vmatpush1.msra.mxu0 %v193
    %1143 = vmatprep.subr.mxu0 %v190
    %1144 = vmatpush1.msra.mxu0 %v189
    %1145 = vmatprep.subr.mxu0 %v186
    %1146 = vmatpush1.msra.mxu0 %v185
    %1147 = vmatprep.subr.mxu0 %v182
    %1148 = vmatpush1.msra.mxu0 %v181
    %1149 = vmatprep.subr.mxu0 %v178
    %1150 = vmatpush1.msra.mxu0 %v177
    %1151 = vmatprep.subr.mxu0 %v174
    %1152 = vmatpush1.msra.mxu0 %v173
    %1153 = vmatprep.subr.mxu0 %v170
    %1154 = vmatpush1.msra.mxu0 %v169
    %1155 = vmatprep.subr.mxu0 %v166
    %1156 = vmatpush1.msra.mxu0 %v165
    %1157 = vmatprep.subr.mxu0 %v162
    %1158 = vmatpush1.msra.mxu0 %v161
    %1159 = vmatprep.subr.mxu0 %v158
    %1160 = vmatpush1.msra.mxu0 %v157
    %1161 = vmatprep.subr.mxu0 %v154
    %1162 = vmatpush1.msra.mxu0 %v153
    %1163 = vmatprep.subr.mxu0 %v150
    %1164 = vmatpush1.msra.mxu0 %v149
    %1165 = vmatprep.subr.mxu0 %v146
    %1166 = vmatpush1.msra.mxu0 %v145
    %1167 = vmatprep.subr.mxu0 %v142
    %1168 = vmatpush1.msra.mxu0 %v141
    %1169 = vmatprep.subr.mxu0 %v266
    %1170 = vmatpush2.msra.mxu0 %v265
    %1171 = vmatprep.subr.mxu0 %v262
    %1172 = vmatpush2.msra.mxu0 %v261
    %1173 = vmatprep.subr.mxu0 %v258
    %1174 = vmatpush2.msra.mxu0 %v257
    %1175 = vmatprep.subr.mxu0 %v254
    %1176 = vmatpush2.msra.mxu0 %v253
    %1177 = vmatprep.subr.mxu0 %v250
    %1178 = vmatpush2.msra.mxu0 %v249
    %1179 = vmatprep.subr.mxu0 %v246
    %1180 = vmatpush2.msra.mxu0 %v245
    %1181 = vmatprep.subr.mxu0 %v242
    %1182 = vmatpush2.msra.mxu0 %v241
    %1183 = vmatprep.subr.mxu0 %v238
    %1184 = vmatpush2.msra.mxu0 %v237
    %1185 = vmatprep.subr.mxu0 %v234
    %1186 = vmatpush2.msra.mxu0 %v233
    %1187 = vmatprep.subr.mxu0 %v230
    %1188 = vmatpush2.msra.mxu0 %v229
    %1189 = vmatprep.subr.mxu0 %v226
    %1190 = vmatpush2.msra.mxu0 %v225
    %1191 = vmatprep.subr.mxu0 %v222
    %1192 = vmatpush2.msra.mxu0 %v221
    %1193 = vmatprep.subr.mxu0 %v218
    %1194 = vmatpush2.msra.mxu0 %v217
    %1195 = vmatprep.subr.mxu0 %v214
    %1196 = vmatpush2.msra.mxu0 %v213
    %1197 = vmatprep.subr.mxu0 %v210
    %1198 = vmatpush2.msra.mxu0 %v209
    %1199 = vmatprep.subr.mxu0 %v206
    %1200 = vmatpush2.msra.mxu0 %v205
    %1201 = vmatprep.mubr.f32.mxu0 %v122
    %1202 = vmatmul.mubr.f32.gmra.mxu0 %v121
    %v1203 = vpop.f32.mrf.mxu0
    %v1204 = vadd.f32 %v819, %v1203
    %v1205 = vpop.f32.mrf.mxu0
    %v1206 = vadd.f32 %v821, %v1205
    %1207 = vmatprep.mubr.f32.mxu0 %v130
    %1208 = vmatmul.mubr.f32.gmra.mxu0 %v129
    %v1209 = vpop.f32.mrf.mxu0
    %v1210 = vadd.f32 %v825, %v1209
    %v1211 = vpop.f32.mrf.mxu0
    %v1212 = vadd.f32 %v827, %v1211
    %1213 = vdwg.mxu0
    %1214 = vmatprep.subr.mxu0 %v330
    %1215 = vmatpush1.msra.mxu0 %v329
    %1216 = vmatprep.subr.mxu0 %v326
    %1217 = vmatpush1.msra.mxu0 %v325
    %1218 = vmatprep.subr.mxu0 %v322
    %1219 = vmatpush1.msra.mxu0 %v321
    %1220 = vmatprep.subr.mxu0 %v318
    %1221 = vmatpush1.msra.mxu0 %v317
    %1222 = vmatprep.subr.mxu0 %v314
    %1223 = vmatpush1.msra.mxu0 %v313
    %1224 = vmatprep.subr.mxu0 %v310
    %1225 = vmatpush1.msra.mxu0 %v309
    %1226 = vmatprep.subr.mxu0 %v306
    %1227 = vmatpush1.msra.mxu0 %v305
    %1228 = vmatprep.subr.mxu0 %v302
    %1229 = vmatpush1.msra.mxu0 %v301
    %1230 = vmatprep.subr.mxu0 %v298
    %1231 = vmatpush1.msra.mxu0 %v297
    %1232 = vmatprep.subr.mxu0 %v294
    %1233 = vmatpush1.msra.mxu0 %v293
    %1234 = vmatprep.subr.mxu0 %v290
    %1235 = vmatpush1.msra.mxu0 %v289
    %1236 = vmatprep.subr.mxu0 %v286
    %1237 = vmatpush1.msra.mxu0 %v285
    %1238 = vmatprep.subr.mxu0 %v282
    %1239 = vmatpush1.msra.mxu0 %v281
    %1240 = vmatprep.subr.mxu0 %v278
    %1241 = vmatpush1.msra.mxu0 %v277
    %1242 = vmatprep.subr.mxu0 %v274
    %1243 = vmatpush1.msra.mxu0 %v273
    %1244 = vmatprep.subr.mxu0 %v270
    %1245 = vmatpush1.msra.mxu0 %v269
    %1246 = vmatprep.subr.mxu0 %v394
    %1247 = vmatpush2.msra.mxu0 %v393
    %1248 = vmatprep.subr.mxu0 %v390
    %1249 = vmatpush2.msra.mxu0 %v389
    %1250 = vmatprep.subr.mxu0 %v386
    %1251 = vmatpush2.msra.mxu0 %v385
    %1252 = vmatprep.subr.mxu0 %v382
    %1253 = vmatpush2.msra.mxu0 %v381
    %1254 = vmatprep.subr.mxu0 %v378
    %1255 = vmatpush2.msra.mxu0 %v377
    %1256 = vmatprep.subr.mxu0 %v374
    %1257 = vmatpush2.msra.mxu0 %v373
    %1258 = vmatprep.subr.mxu0 %v370
    %1259 = vmatpush2.msra.mxu0 %v369
    %1260 = vmatprep.subr.mxu0 %v366
    %1261 = vmatpush2.msra.mxu0 %v365
    %1262 = vmatprep.subr.mxu0 %v362
    %1263 = vmatpush2.msra.mxu0 %v361
    %1264 = vmatprep.subr.mxu0 %v358
    %1265 = vmatpush2.msra.mxu0 %v357
    %1266 = vmatprep.subr.mxu0 %v354
    %1267 = vmatpush2.msra.mxu0 %v353
    %1268 = vmatprep.subr.mxu0 %v350
    %1269 = vmatpush2.msra.mxu0 %v349
    %1270 = vmatprep.subr.mxu0 %v346
    %1271 = vmatpush2.msra.mxu0 %v345
    %1272 = vmatprep.subr.mxu0 %v342
    %1273 = vmatpush2.msra.mxu0 %v341
    %1274 = vmatprep.subr.mxu0 %v338
    %1275 = vmatpush2.msra.mxu0 %v337
    %1276 = vmatprep.subr.mxu0 %v334
    %1277 = vmatpush2.msra.mxu0 %v333
    %1278 = vmatprep.mubr.f32.mxu0 %v124
    %1279 = vmatmul.mubr.f32.gmra.mxu0 %v123
    %v1280 = vpop.f32.mrf.mxu0
    %v1281 = vadd.f32 %v1204, %v1280
    %v1282 = vpop.f32.mrf.mxu0
    %v1283 = vadd.f32 %v1206, %v1282
    %1284 = vmatprep.mubr.f32.mxu0 %v132
    %1285 = vmatmul.mubr.f32.gmra.mxu0 %v131
    %v1286 = vpop.f32.mrf.mxu0
    %v1287 = vadd.f32 %v1210, %v1286
    %v1288 = vpop.f32.mrf.mxu0
    %v1289 = vadd.f32 %v1212, %v1288
    %1290 = vdwg.mxu0
    %1291 = vmatprep.subr.mxu0 %v458
    %1292 = vmatpush1.msra.mxu0 %v457
    %1293 = vmatprep.subr.mxu0 %v454
    %1294 = vmatpush1.msra.mxu0 %v453
    %1295 = vmatprep.subr.mxu0 %v450
    %1296 = vmatpush1.msra.mxu0 %v449
    %1297 = vmatprep.subr.mxu0 %v446
    %1298 = vmatpush1.msra.mxu0 %v445
    %1299 = vmatprep.subr.mxu0 %v442
    %1300 = vmatpush1.msra.mxu0 %v441
    %1301 = vmatprep.subr.mxu0 %v438
    %1302 = vmatpush1.msra.mxu0 %v437
    %1303 = vmatprep.subr.mxu0 %v434
    %1304 = vmatpush1.msra.mxu0 %v433
    %1305 = vmatprep.subr.mxu0 %v430
    %1306 = vmatpush1.msra.mxu0 %v429
    %1307 = vmatprep.subr.mxu0 %v426
    %1308 = vmatpush1.msra.mxu0 %v425
    %1309 = vmatprep.subr.mxu0 %v422
    %1310 = vmatpush1.msra.mxu0 %v421
    %1311 = vmatprep.subr.mxu0 %v418
    %1312 = vmatpush1.msra.mxu0 %v417
    %1313 = vmatprep.subr.mxu0 %v414
    %1314 = vmatpush1.msra.mxu0 %v413
    %1315 = vmatprep.subr.mxu0 %v410
    %1316 = vmatpush1.msra.mxu0 %v409
    %1317 = vmatprep.subr.mxu0 %v406
    %1318 = vmatpush1.msra.mxu0 %v405
    %1319 = vmatprep.subr.mxu0 %v402
    %1320 = vmatpush1.msra.mxu0 %v401
    %1321 = vmatprep.subr.mxu0 %v398
    %1322 = vmatpush1.msra.mxu0 %v397
    %1323 = vmatprep.subr.mxu0 %v522
    %1324 = vmatpush2.msra.mxu0 %v521
    %1325 = vmatprep.subr.mxu0 %v518
    %1326 = vmatpush2.msra.mxu0 %v517
    %1327 = vmatprep.subr.mxu0 %v514
    %1328 = vmatpush2.msra.mxu0 %v513
    %1329 = vmatprep.subr.mxu0 %v510
    %1330 = vmatpush2.msra.mxu0 %v509
    %1331 = vmatprep.subr.mxu0 %v506
    %1332 = vmatpush2.msra.mxu0 %v505
    %1333 = vmatprep.subr.mxu0 %v502
    %1334 = vmatpush2.msra.mxu0 %v501
    %1335 = vmatprep.subr.mxu0 %v498
    %1336 = vmatpush2.msra.mxu0 %v497
    %1337 = vmatprep.subr.mxu0 %v494
    %1338 = vmatpush2.msra.mxu0 %v493
    %1339 = vmatprep.subr.mxu0 %v490
    %1340 = vmatpush2.msra.mxu0 %v489
    %1341 = vmatprep.subr.mxu0 %v486
    %1342 = vmatpush2.msra.mxu0 %v485
    %1343 = vmatprep.subr.mxu0 %v482
    %1344 = vmatpush2.msra.mxu0 %v481
    %1345 = vmatprep.subr.mxu0 %v478
    %1346 = vmatpush2.msra.mxu0 %v477
    %1347 = vmatprep.subr.mxu0 %v474
    %1348 = vmatpush2.msra.mxu0 %v473
    %1349 = vmatprep.subr.mxu0 %v470
    %1350 = vmatpush2.msra.mxu0 %v469
    %1351 = vmatprep.subr.mxu0 %v466
    %1352 = vmatpush2.msra.mxu0 %v465
    %1353 = vmatprep.subr.mxu0 %v462
    %1354 = vmatpush2.msra.mxu0 %v461
    %1355 = vmatprep.mubr.f32.mxu0 %v126
    %1356 = vmatmul.mubr.f32.gmra.mxu0 %v125
    %v1357 = vpop.f32.mrf.mxu0
    %v1358 = vadd.f32 %v1281, %v1357
    %v1359 = vpop.f32.mrf.mxu0
    %v1360 = vadd.f32 %v1283, %v1359
    %1361 = vmatprep.mubr.f32.mxu0 %v134
    %1362 = vmatmul.mubr.f32.gmra.mxu0 %v133
    %v1363 = vpop.f32.mrf.mxu0
    %v1364 = vadd.f32 %v1287, %v1363
    %v1365 = vpop.f32.mrf.mxu0
    %v1366 = vadd.f32 %v1289, %v1365
    %1367 = vdwg.mxu0
    %1368 = vmatprep.subr.mxu0 %v586
    %1369 = vmatpush1.msra.mxu0 %v585
    %1370 = vmatprep.subr.mxu0 %v582
    %1371 = vmatpush1.msra.mxu0 %v581
    %1372 = vmatprep.subr.mxu0 %v578
    %1373 = vmatpush1.msra.mxu0 %v577
    %1374 = vmatprep.subr.mxu0 %v574
    %1375 = vmatpush1.msra.mxu0 %v573
    %1376 = vmatprep.subr.mxu0 %v570
    %1377 = vmatpush1.msra.mxu0 %v569
    %1378 = vmatprep.subr.mxu0 %v566
    %1379 = vmatpush1.msra.mxu0 %v565
    %1380 = vmatprep.subr.mxu0 %v562
    %1381 = vmatpush1.msra.mxu0 %v561
    %1382 = vmatprep.subr.mxu0 %v558
    %1383 = vmatpush1.msra.mxu0 %v557
    %1384 = vmatprep.subr.mxu0 %v554
    %1385 = vmatpush1.msra.mxu0 %v553
    %1386 = vmatprep.subr.mxu0 %v550
    %1387 = vmatpush1.msra.mxu0 %v549
    %1388 = vmatprep.subr.mxu0 %v546
    %1389 = vmatpush1.msra.mxu0 %v545
    %1390 = vmatprep.subr.mxu0 %v542
    %1391 = vmatpush1.msra.mxu0 %v541
    %1392 = vmatprep.subr.mxu0 %v538
    %1393 = vmatpush1.msra.mxu0 %v537
    %1394 = vmatprep.subr.mxu0 %v534
    %1395 = vmatpush1.msra.mxu0 %v533
    %1396 = vmatprep.subr.mxu0 %v530
    %1397 = vmatpush1.msra.mxu0 %v529
    %1398 = vmatprep.subr.mxu0 %v526
    %1399 = vmatpush1.msra.mxu0 %v525
    %1400 = vmatprep.subr.mxu0 %v650
    %1401 = vmatpush2.msra.mxu0 %v649
    %1402 = vmatprep.subr.mxu0 %v646
    %1403 = vmatpush2.msra.mxu0 %v645
    %1404 = vmatprep.subr.mxu0 %v642
    %1405 = vmatpush2.msra.mxu0 %v641
    %1406 = vmatprep.subr.mxu0 %v638
    %1407 = vmatpush2.msra.mxu0 %v637
    %1408 = vmatprep.subr.mxu0 %v634
    %1409 = vmatpush2.msra.mxu0 %v633
    %1410 = vmatprep.subr.mxu0 %v630
    %1411 = vmatpush2.msra.mxu0 %v629
    %1412 = vmatprep.subr.mxu0 %v626
    %1413 = vmatpush2.msra.mxu0 %v625
    %1414 = vmatprep.subr.mxu0 %v622
    %1415 = vmatpush2.msra.mxu0 %v621
    %1416 = vmatprep.subr.mxu0 %v618
    %1417 = vmatpush2.msra.mxu0 %v617
    %1418 = vmatprep.subr.mxu0 %v614
    %1419 = vmatpush2.msra.mxu0 %v613
    %1420 = vmatprep.subr.mxu0 %v610
    %1421 = vmatpush2.msra.mxu0 %v609
    %1422 = vmatprep.subr.mxu0 %v606
    %1423 = vmatpush2.msra.mxu0 %v605
    %1424 = vmatprep.subr.mxu0 %v602
    %1425 = vmatpush2.msra.mxu0 %v601
    %1426 = vmatprep.subr.mxu0 %v598
    %1427 = vmatpush2.msra.mxu0 %v597
    %1428 = vmatprep.subr.mxu0 %v594
    %1429 = vmatpush2.msra.mxu0 %v593
    %1430 = vmatprep.subr.mxu0 %v590
    %1431 = vmatpush2.msra.mxu0 %v589
    %1432 = vmatprep.mubr.f32.mxu0 %v128
    %1433 = vmatmul.mubr.f32.gmra.mxu0 %v127
    %v1434 = vpop.f32.mrf.mxu0
    %v1435 = vadd.f32 %v1358, %v1434
    %v1436 = vpop.f32.mrf.mxu0
    %v1437 = vadd.f32 %v1360, %v1436
    %1438 = vmatprep.mubr.f32.mxu0 %v136
    %1439 = vmatmul.mubr.f32.gmra.mxu0 %v135
    %v1440 = vpop.f32.mrf.mxu0
    %v1441 = vadd.f32 %v1364, %v1440
    %v1442 = vpop.f32.mrf.mxu0
    %v1443 = vadd.f32 %v1366, %v1442
    %1444 = vdwg.mxu0
    %v1445 = vld [vmem:[#allocation8] sm:$0xf]
    %v1447 = vlaneseq
    %v1448 = vshrl.u32 %v1447, 7
    %v1449 = vsub.s32 0, %v1448
    %v1450 = vrot.slane %v1445, %v1449
    %v1451 = vlaneseq
    %v1452 = vshrl.u32 %v1451, 7
    %v1453 = vsub.s32 1, %v1452
    %v1454 = vrot.slane %v1445, %v1453
    %v1455 = vlaneseq
    %v1456 = vshrl.u32 %v1455, 7
    %v1457 = vsub.s32 2, %v1456
    %v1458 = vrot.slane %v1445, %v1457
    %v1459 = vlaneseq
    %v1460 = vshrl.u32 %v1459, 7
    %v1461 = vsub.s32 3, %v1460
    %v1462 = vrot.slane %v1445, %v1461
    %v1467 = vadd.f32 %v1127, %v1450
    %v1468 = vadd.f32 %v1129, %v1454
    %v1469 = vadd.f32 %v1435, %v1458
    %v1470 = vadd.f32 %v1437, %v1462
    %v1471 = vadd.f32 %v1133, %v1450
    %v1472 = vadd.f32 %v1135, %v1454
    %v1473 = vadd.f32 %v1441, %v1458
    %v1474 = vadd.f32 %v1443, %v1462
    %v1475 = vmax.f32 %v1467, 0.0
    %v1476 = vmax.f32 %v1468, 0.0
    %v1477 = vmax.f32 %v1469, 0.0
    %v1478 = vmax.f32 %v1470, 0.0
    %v1479 = vmax.f32 %v1471, 0.0
    %v1480 = vmax.f32 %v1472, 0.0
    %v1481 = vmax.f32 %v1473, 0.0
    %v1482 = vmax.f32 %v1474, 0.0
    %v1483 = vld [vmem:[#allocation10] sm:$0xff]
    %v1484 = vld [vmem:[#allocation10 + $0x8] sm:$0xff]
    %v1485 = vld [vmem:[#allocation10 + $0x10] sm:$0xff]
    %v1486 = vld [vmem:[#allocation10 + $0x18] sm:$0xff]
    %v1487 = vld [vmem:[#allocation10 + $0x20] sm:$0xff]
    %v1488 = vld [vmem:[#allocation10 + $0x28] sm:$0xff]
    %v1489 = vld [vmem:[#allocation10 + $0x30] sm:$0xff]
    %v1490 = vld [vmem:[#allocation10 + $0x38] sm:$0xff]
    %v1491 = vld [vmem:[#allocation10 + $0x40] sm:$0xff]
    %v1492 = vld [vmem:[#allocation10 + $0x48] sm:$0xff]
    %v1493 = vld [vmem:[#allocation10 + $0x50] sm:$0xff]
    %v1494 = vld [vmem:[#allocation10 + $0x58] sm:$0xff]
    %v1495 = vld [vmem:[#allocation10 + $0x60] sm:$0xff]
    %v1496 = vld [vmem:[#allocation10 + $0x68] sm:$0xff]
    %v1497 = vld [vmem:[#allocation10 + $0x70] sm:$0xff]
    %v1498 = vld [vmem:[#allocation10 + $0x78] sm:$0xff]
    %v1499 = vld [vmem:[#allocation10 + $0x80] sm:$0xff]
    %v1500 = vld [vmem:[#allocation10 + $0x88] sm:$0xff]
    %v1501 = vld [vmem:[#allocation10 + $0x90] sm:$0xff]
    %v1502 = vld [vmem:[#allocation10 + $0x98] sm:$0xff]
    %v1503 = vld [vmem:[#allocation10 + $0xa0] sm:$0xff]
    %v1504 = vld [vmem:[#allocation10 + $0xa8] sm:$0xff]
    %v1505 = vld [vmem:[#allocation10 + $0xb0] sm:$0xff]
    %v1506 = vld [vmem:[#allocation10 + $0xb8] sm:$0xff]
    %v1507 = vld [vmem:[#allocation10 + $0xc0] sm:$0xff]
    %v1508 = vld [vmem:[#allocation10 + $0xc8] sm:$0xff]
    %v1509 = vld [vmem:[#allocation10 + $0xd0] sm:$0xff]
    %v1510 = vld [vmem:[#allocation10 + $0xd8] sm:$0xff]
    %v1511 = vld [vmem:[#allocation10 + $0xe0] sm:$0xff]
    %v1512 = vld [vmem:[#allocation10 + $0xe8] sm:$0xff]
    %v1513 = vld [vmem:[#allocation10 + $0xf0] sm:$0xff]
    %v1514 = vld [vmem:[#allocation10 + $0xf8] sm:$0xff]
    %v1515 = vld [vmem:[#allocation10 + $0x100] sm:$0xff]
    %v1516 = vld [vmem:[#allocation10 + $0x108] sm:$0xff]
    %v1517 = vld [vmem:[#allocation10 + $0x110] sm:$0xff]
    %v1518 = vld [vmem:[#allocation10 + $0x118] sm:$0xff]
    %v1519 = vld [vmem:[#allocation10 + $0x120] sm:$0xff]
    %v1520 = vld [vmem:[#allocation10 + $0x128] sm:$0xff]
    %v1521 = vld [vmem:[#allocation10 + $0x130] sm:$0xff]
    %v1522 = vld [vmem:[#allocation10 + $0x138] sm:$0xff]
    %v1523 = vld [vmem:[#allocation10 + $0x140] sm:$0xff]
    %v1524 = vld [vmem:[#allocation10 + $0x148] sm:$0xff]
    %v1525 = vld [vmem:[#allocation10 + $0x150] sm:$0xff]
    %v1526 = vld [vmem:[#allocation10 + $0x158] sm:$0xff]
    %v1527 = vld [vmem:[#allocation10 + $0x160] sm:$0xff]
    %v1528 = vld [vmem:[#allocation10 + $0x168] sm:$0xff]
    %v1529 = vld [vmem:[#allocation10 + $0x170] sm:$0xff]
    %v1530 = vld [vmem:[#allocation10 + $0x178] sm:$0xff]
    %v1531 = vld [vmem:[#allocation10 + $0x180] sm:$0xff]
    %v1532 = vld [vmem:[#allocation10 + $0x188] sm:$0xff]
    %v1533 = vld [vmem:[#allocation10 + $0x190] sm:$0xff]
    %v1534 = vld [vmem:[#allocation10 + $0x198] sm:$0xff]
    %v1535 = vld [vmem:[#allocation10 + $0x1a0] sm:$0xff]
    %v1536 = vld [vmem:[#allocation10 + $0x1a8] sm:$0xff]
    %v1537 = vld [vmem:[#allocation10 + $0x1b0] sm:$0xff]
    %v1538 = vld [vmem:[#allocation10 + $0x1b8] sm:$0xff]
    %v1539 = vld [vmem:[#allocation10 + $0x1c0] sm:$0xff]
    %v1540 = vld [vmem:[#allocation10 + $0x1c8] sm:$0xff]
    %v1541 = vld [vmem:[#allocation10 + $0x1d0] sm:$0xff]
    %v1542 = vld [vmem:[#allocation10 + $0x1d8] sm:$0xff]
    %v1543 = vld [vmem:[#allocation10 + $0x1e0] sm:$0xff]
    %v1544 = vld [vmem:[#allocation10 + $0x1e8] sm:$0xff]
    %v1545 = vld [vmem:[#allocation10 + $0x1f0] sm:$0xff]
    %v1546 = vld [vmem:[#allocation10 + $0x1f8] sm:$0xff]
    %v1547 = vld [vmem:[#allocation10 + $0x200] sm:$0xff]
    %v1548 = vld [vmem:[#allocation10 + $0x208] sm:$0xff]
    %v1549 = vld [vmem:[#allocation10 + $0x210] sm:$0xff]
    %v1550 = vld [vmem:[#allocation10 + $0x218] sm:$0xff]
    %v1551 = vld [vmem:[#allocation10 + $0x220] sm:$0xff]
    %v1552 = vld [vmem:[#allocation10 + $0x228] sm:$0xff]
    %v1553 = vld [vmem:[#allocation10 + $0x230] sm:$0xff]
    %v1554 = vld [vmem:[#allocation10 + $0x238] sm:$0xff]
    %v1555 = vld [vmem:[#allocation10 + $0x240] sm:$0xff]
    %v1556 = vld [vmem:[#allocation10 + $0x248] sm:$0xff]
    %v1557 = vld [vmem:[#allocation10 + $0x250] sm:$0xff]
    %v1558 = vld [vmem:[#allocation10 + $0x258] sm:$0xff]
    %v1559 = vld [vmem:[#allocation10 + $0x260] sm:$0xff]
    %v1560 = vld [vmem:[#allocation10 + $0x268] sm:$0xff]
    %v1561 = vld [vmem:[#allocation10 + $0x270] sm:$0xff]
    %v1562 = vld [vmem:[#allocation10 + $0x278] sm:$0xff]
    %v1563 = vld [vmem:[#allocation10 + $0x280] sm:$0xff]
    %v1564 = vld [vmem:[#allocation10 + $0x288] sm:$0xff]
    %v1565 = vld [vmem:[#allocation10 + $0x290] sm:$0xff]
    %v1566 = vld [vmem:[#allocation10 + $0x298] sm:$0xff]
    %v1567 = vld [vmem:[#allocation10 + $0x2a0] sm:$0xff]
    %v1568 = vld [vmem:[#allocation10 + $0x2a8] sm:$0xff]
    %v1569 = vld [vmem:[#allocation10 + $0x2b0] sm:$0xff]
    %v1570 = vld [vmem:[#allocation10 + $0x2b8] sm:$0xff]
    %v1571 = vld [vmem:[#allocation10 + $0x2c0] sm:$0xff]
    %v1572 = vld [vmem:[#allocation10 + $0x2c8] sm:$0xff]
    %v1573 = vld [vmem:[#allocation10 + $0x2d0] sm:$0xff]
    %v1574 = vld [vmem:[#allocation10 + $0x2d8] sm:$0xff]
    %v1575 = vld [vmem:[#allocation10 + $0x2e0] sm:$0xff]
    %v1576 = vld [vmem:[#allocation10 + $0x2e8] sm:$0xff]
    %v1577 = vld [vmem:[#allocation10 + $0x2f0] sm:$0xff]
    %v1578 = vld [vmem:[#allocation10 + $0x2f8] sm:$0xff]
    %v1579 = vld [vmem:[#allocation10 + $0x300] sm:$0xff]
    %v1580 = vld [vmem:[#allocation10 + $0x308] sm:$0xff]
    %v1581 = vld [vmem:[#allocation10 + $0x310] sm:$0xff]
    %v1582 = vld [vmem:[#allocation10 + $0x318] sm:$0xff]
    %v1583 = vld [vmem:[#allocation10 + $0x320] sm:$0xff]
    %v1584 = vld [vmem:[#allocation10 + $0x328] sm:$0xff]
    %v1585 = vld [vmem:[#allocation10 + $0x330] sm:$0xff]
    %v1586 = vld [vmem:[#allocation10 + $0x338] sm:$0xff]
    %v1587 = vld [vmem:[#allocation10 + $0x340] sm:$0xff]
    %v1588 = vld [vmem:[#allocation10 + $0x348] sm:$0xff]
    %v1589 = vld [vmem:[#allocation10 + $0x350] sm:$0xff]
    %v1590 = vld [vmem:[#allocation10 + $0x358] sm:$0xff]
    %v1591 = vld [vmem:[#allocation10 + $0x360] sm:$0xff]
    %v1592 = vld [vmem:[#allocation10 + $0x368] sm:$0xff]
    %v1593 = vld [vmem:[#allocation10 + $0x370] sm:$0xff]
    %v1594 = vld [vmem:[#allocation10 + $0x378] sm:$0xff]
    %v1595 = vld [vmem:[#allocation10 + $0x380] sm:$0xff]
    %v1596 = vld [vmem:[#allocation10 + $0x388] sm:$0xff]
    %v1597 = vld [vmem:[#allocation10 + $0x390] sm:$0xff]
    %v1598 = vld [vmem:[#allocation10 + $0x398] sm:$0xff]
    %v1599 = vld [vmem:[#allocation10 + $0x3a0] sm:$0xff]
    %v1600 = vld [vmem:[#allocation10 + $0x3a8] sm:$0xff]
    %v1601 = vld [vmem:[#allocation10 + $0x3b0] sm:$0xff]
    %v1602 = vld [vmem:[#allocation10 + $0x3b8] sm:$0xff]
    %v1603 = vld [vmem:[#allocation10 + $0x3c0] sm:$0xff]
    %v1604 = vld [vmem:[#allocation10 + $0x3c8] sm:$0xff]
    %v1605 = vld [vmem:[#allocation10 + $0x3d0] sm:$0xff]
    %v1606 = vld [vmem:[#allocation10 + $0x3d8] sm:$0xff]
    %v1607 = vld [vmem:[#allocation10 + $0x3e0] sm:$0xff]
    %v1608 = vld [vmem:[#allocation10 + $0x3e8] sm:$0xff]
    %v1609 = vld [vmem:[#allocation10 + $0x3f0] sm:$0xff]
    %v1610 = vld [vmem:[#allocation10 + $0x3f8] sm:$0xff]
    %v1611 = vld [vmem:[#allocation10 + $0x400] sm:$0xff]
    %v1612 = vld [vmem:[#allocation10 + $0x408] sm:$0xff]
    %v1613 = vld [vmem:[#allocation10 + $0x410] sm:$0xff]
    %v1614 = vld [vmem:[#allocation10 + $0x418] sm:$0xff]
    %v1615 = vld [vmem:[#allocation10 + $0x420] sm:$0xff]
    %v1616 = vld [vmem:[#allocation10 + $0x428] sm:$0xff]
    %v1617 = vld [vmem:[#allocation10 + $0x430] sm:$0xff]
    %v1618 = vld [vmem:[#allocation10 + $0x438] sm:$0xff]
    %v1619 = vld [vmem:[#allocation10 + $0x440] sm:$0xff]
    %v1620 = vld [vmem:[#allocation10 + $0x448] sm:$0xff]
    %v1621 = vld [vmem:[#allocation10 + $0x450] sm:$0xff]
    %v1622 = vld [vmem:[#allocation10 + $0x458] sm:$0xff]
    %v1623 = vld [vmem:[#allocation10 + $0x460] sm:$0xff]
    %v1624 = vld [vmem:[#allocation10 + $0x468] sm:$0xff]
    %v1625 = vld [vmem:[#allocation10 + $0x470] sm:$0xff]
    %v1626 = vld [vmem:[#allocation10 + $0x478] sm:$0xff]
    %v1627 = vld [vmem:[#allocation10 + $0x480] sm:$0xff]
    %v1628 = vld [vmem:[#allocation10 + $0x488] sm:$0xff]
    %v1629 = vld [vmem:[#allocation10 + $0x490] sm:$0xff]
    %v1630 = vld [vmem:[#allocation10 + $0x498] sm:$0xff]
    %v1631 = vld [vmem:[#allocation10 + $0x4a0] sm:$0xff]
    %v1632 = vld [vmem:[#allocation10 + $0x4a8] sm:$0xff]
    %v1633 = vld [vmem:[#allocation10 + $0x4b0] sm:$0xff]
    %v1634 = vld [vmem:[#allocation10 + $0x4b8] sm:$0xff]
    %v1635 = vld [vmem:[#allocation10 + $0x4c0] sm:$0xff]
    %v1636 = vld [vmem:[#allocation10 + $0x4c8] sm:$0xff]
    %v1637 = vld [vmem:[#allocation10 + $0x4d0] sm:$0xff]
    %v1638 = vld [vmem:[#allocation10 + $0x4d8] sm:$0xff]
    %v1639 = vld [vmem:[#allocation10 + $0x4e0] sm:$0xff]
    %v1640 = vld [vmem:[#allocation10 + $0x4e8] sm:$0xff]
    %v1641 = vld [vmem:[#allocation10 + $0x4f0] sm:$0xff]
    %v1642 = vld [vmem:[#allocation10 + $0x4f8] sm:$0xff]
    %v1643 = vld [vmem:[#allocation10 + $0x500] sm:$0xff]
    %v1644 = vld [vmem:[#allocation10 + $0x508] sm:$0xff]
    %v1645 = vld [vmem:[#allocation10 + $0x510] sm:$0xff]
    %v1646 = vld [vmem:[#allocation10 + $0x518] sm:$0xff]
    %v1647 = vld [vmem:[#allocation10 + $0x520] sm:$0xff]
    %v1648 = vld [vmem:[#allocation10 + $0x528] sm:$0xff]
    %v1649 = vld [vmem:[#allocation10 + $0x530] sm:$0xff]
    %v1650 = vld [vmem:[#allocation10 + $0x538] sm:$0xff]
    %v1651 = vld [vmem:[#allocation10 + $0x540] sm:$0xff]
    %v1652 = vld [vmem:[#allocation10 + $0x548] sm:$0xff]
    %v1653 = vld [vmem:[#allocation10 + $0x550] sm:$0xff]
    %v1654 = vld [vmem:[#allocation10 + $0x558] sm:$0xff]
    %v1655 = vld [vmem:[#allocation10 + $0x560] sm:$0xff]
    %v1656 = vld [vmem:[#allocation10 + $0x568] sm:$0xff]
    %v1657 = vld [vmem:[#allocation10 + $0x570] sm:$0xff]
    %v1658 = vld [vmem:[#allocation10 + $0x578] sm:$0xff]
    %v1659 = vld [vmem:[#allocation10 + $0x580] sm:$0xff]
    %v1660 = vld [vmem:[#allocation10 + $0x588] sm:$0xff]
    %v1661 = vld [vmem:[#allocation10 + $0x590] sm:$0xff]
    %v1662 = vld [vmem:[#allocation10 + $0x598] sm:$0xff]
    %v1663 = vld [vmem:[#allocation10 + $0x5a0] sm:$0xff]
    %v1664 = vld [vmem:[#allocation10 + $0x5a8] sm:$0xff]
    %v1665 = vld [vmem:[#allocation10 + $0x5b0] sm:$0xff]
    %v1666 = vld [vmem:[#allocation10 + $0x5b8] sm:$0xff]
    %v1667 = vld [vmem:[#allocation10 + $0x5c0] sm:$0xff]
    %v1668 = vld [vmem:[#allocation10 + $0x5c8] sm:$0xff]
    %v1669 = vld [vmem:[#allocation10 + $0x5d0] sm:$0xff]
    %v1670 = vld [vmem:[#allocation10 + $0x5d8] sm:$0xff]
    %v1671 = vld [vmem:[#allocation10 + $0x5e0] sm:$0xff]
    %v1672 = vld [vmem:[#allocation10 + $0x5e8] sm:$0xff]
    %v1673 = vld [vmem:[#allocation10 + $0x5f0] sm:$0xff]
    %v1674 = vld [vmem:[#allocation10 + $0x5f8] sm:$0xff]
    %v1675 = vld [vmem:[#allocation10 + $0x600] sm:$0xff]
    %v1676 = vld [vmem:[#allocation10 + $0x608] sm:$0xff]
    %v1677 = vld [vmem:[#allocation10 + $0x610] sm:$0xff]
    %v1678 = vld [vmem:[#allocation10 + $0x618] sm:$0xff]
    %v1679 = vld [vmem:[#allocation10 + $0x620] sm:$0xff]
    %v1680 = vld [vmem:[#allocation10 + $0x628] sm:$0xff]
    %v1681 = vld [vmem:[#allocation10 + $0x630] sm:$0xff]
    %v1682 = vld [vmem:[#allocation10 + $0x638] sm:$0xff]
    %v1683 = vld [vmem:[#allocation10 + $0x640] sm:$0xff]
    %v1684 = vld [vmem:[#allocation10 + $0x648] sm:$0xff]
    %v1685 = vld [vmem:[#allocation10 + $0x650] sm:$0xff]
    %v1686 = vld [vmem:[#allocation10 + $0x658] sm:$0xff]
    %v1687 = vld [vmem:[#allocation10 + $0x660] sm:$0xff]
    %v1688 = vld [vmem:[#allocation10 + $0x668] sm:$0xff]
    %v1689 = vld [vmem:[#allocation10 + $0x670] sm:$0xff]
    %v1690 = vld [vmem:[#allocation10 + $0x678] sm:$0xff]
    %v1691 = vld [vmem:[#allocation10 + $0x680] sm:$0xff]
    %v1692 = vld [vmem:[#allocation10 + $0x688] sm:$0xff]
    %v1693 = vld [vmem:[#allocation10 + $0x690] sm:$0xff]
    %v1694 = vld [vmem:[#allocation10 + $0x698] sm:$0xff]
    %v1695 = vld [vmem:[#allocation10 + $0x6a0] sm:$0xff]
    %v1696 = vld [vmem:[#allocation10 + $0x6a8] sm:$0xff]
    %v1697 = vld [vmem:[#allocation10 + $0x6b0] sm:$0xff]
    %v1698 = vld [vmem:[#allocation10 + $0x6b8] sm:$0xff]
    %v1699 = vld [vmem:[#allocation10 + $0x6c0] sm:$0xff]
    %v1700 = vld [vmem:[#allocation10 + $0x6c8] sm:$0xff]
    %v1701 = vld [vmem:[#allocation10 + $0x6d0] sm:$0xff]
    %v1702 = vld [vmem:[#allocation10 + $0x6d8] sm:$0xff]
    %v1703 = vld [vmem:[#allocation10 + $0x6e0] sm:$0xff]
    %v1704 = vld [vmem:[#allocation10 + $0x6e8] sm:$0xff]
    %v1705 = vld [vmem:[#allocation10 + $0x6f0] sm:$0xff]
    %v1706 = vld [vmem:[#allocation10 + $0x6f8] sm:$0xff]
    %v1707 = vld [vmem:[#allocation10 + $0x700] sm:$0xff]
    %v1708 = vld [vmem:[#allocation10 + $0x708] sm:$0xff]
    %v1709 = vld [vmem:[#allocation10 + $0x710] sm:$0xff]
    %v1710 = vld [vmem:[#allocation10 + $0x718] sm:$0xff]
    %v1711 = vld [vmem:[#allocation10 + $0x720] sm:$0xff]
    %v1712 = vld [vmem:[#allocation10 + $0x728] sm:$0xff]
    %v1713 = vld [vmem:[#allocation10 + $0x730] sm:$0xff]
    %v1714 = vld [vmem:[#allocation10 + $0x738] sm:$0xff]
    %v1715 = vld [vmem:[#allocation10 + $0x740] sm:$0xff]
    %v1716 = vld [vmem:[#allocation10 + $0x748] sm:$0xff]
    %v1717 = vld [vmem:[#allocation10 + $0x750] sm:$0xff]
    %v1718 = vld [vmem:[#allocation10 + $0x758] sm:$0xff]
    %v1719 = vld [vmem:[#allocation10 + $0x760] sm:$0xff]
    %v1720 = vld [vmem:[#allocation10 + $0x768] sm:$0xff]
    %v1721 = vld [vmem:[#allocation10 + $0x770] sm:$0xff]
    %v1722 = vld [vmem:[#allocation10 + $0x778] sm:$0xff]
    %v1723 = vld [vmem:[#allocation10 + $0x780] sm:$0xff]
    %v1724 = vld [vmem:[#allocation10 + $0x788] sm:$0xff]
    %v1725 = vld [vmem:[#allocation10 + $0x790] sm:$0xff]
    %v1726 = vld [vmem:[#allocation10 + $0x798] sm:$0xff]
    %v1727 = vld [vmem:[#allocation10 + $0x7a0] sm:$0xff]
    %v1728 = vld [vmem:[#allocation10 + $0x7a8] sm:$0xff]
    %v1729 = vld [vmem:[#allocation10 + $0x7b0] sm:$0xff]
    %v1730 = vld [vmem:[#allocation10 + $0x7b8] sm:$0xff]
    %v1731 = vld [vmem:[#allocation10 + $0x7c0] sm:$0xff]
    %v1732 = vld [vmem:[#allocation10 + $0x7c8] sm:$0xff]
    %v1733 = vld [vmem:[#allocation10 + $0x7d0] sm:$0xff]
    %v1734 = vld [vmem:[#allocation10 + $0x7d8] sm:$0xff]
    %v1735 = vld [vmem:[#allocation10 + $0x7e0] sm:$0xff]
    %v1736 = vld [vmem:[#allocation10 + $0x7e8] sm:$0xff]
    %v1737 = vld [vmem:[#allocation10 + $0x7f0] sm:$0xff]
    %v1738 = vld [vmem:[#allocation10 + $0x7f8] sm:$0xff]
    %v1739 = vld [vmem:[#allocation11] sm:$0xf]
    %v1741 = vlaneseq
    %v1742 = vshrl.u32 %v1741, 7
    %v1743 = vsub.s32 0, %v1742
    %v1744 = vrot.slane %v1739, %v1743
    %v1745 = vlaneseq
    %v1746 = vshrl.u32 %v1745, 7
    %v1747 = vsub.s32 1, %v1746
    %v1748 = vrot.slane %v1739, %v1747
    %v1749 = vlaneseq
    %v1750 = vshrl.u32 %v1749, 7
    %v1751 = vsub.s32 2, %v1750
    %v1752 = vrot.slane %v1739, %v1751
    %v1753 = vlaneseq
    %v1754 = vshrl.u32 %v1753, 7
    %v1755 = vsub.s32 3, %v1754
    %v1756 = vrot.slane %v1739, %v1755
    %1761 = vmatprep.subr.mxu0 %v1544
    %1762 = vmatpush1.msra.mxu0 %v1543
    %1763 = vmatprep.subr.mxu0 %v1540
    %1764 = vmatpush1.msra.mxu0 %v1539
    %1765 = vmatprep.subr.mxu0 %v1536
    %1766 = vmatpush1.msra.mxu0 %v1535
    %1767 = vmatprep.subr.mxu0 %v1532
    %1768 = vmatpush1.msra.mxu0 %v1531
    %1769 = vmatprep.subr.mxu0 %v1528
    %1770 = vmatpush1.msra.mxu0 %v1527
    %1771 = vmatprep.subr.mxu0 %v1524
    %1772 = vmatpush1.msra.mxu0 %v1523
    %1773 = vmatprep.subr.mxu0 %v1520
    %1774 = vmatpush1.msra.mxu0 %v1519
    %1775 = vmatprep.subr.mxu0 %v1516
    %1776 = vmatpush1.msra.mxu0 %v1515
    %1777 = vmatprep.subr.mxu0 %v1512
    %1778 = vmatpush1.msra.mxu0 %v1511
    %1779 = vmatprep.subr.mxu0 %v1508
    %1780 = vmatpush1.msra.mxu0 %v1507
    %1781 = vmatprep.subr.mxu0 %v1504
    %1782 = vmatpush1.msra.mxu0 %v1503
    %1783 = vmatprep.subr.mxu0 %v1500
    %1784 = vmatpush1.msra.mxu0 %v1499
    %1785 = vmatprep.subr.mxu0 %v1496
    %1786 = vmatpush1.msra.mxu0 %v1495
    %1787 = vmatprep.subr.mxu0 %v1492
    %1788 = vmatpush1.msra.mxu0 %v1491
    %1789 = vmatprep.subr.mxu0 %v1488
    %1790 = vmatpush1.msra.mxu0 %v1487
    %1791 = vmatprep.subr.mxu0 %v1484
    %1792 = vmatpush1.msra.mxu0 %v1483
    %1793 = vmatprep.subr.mxu0 %v1608
    %1794 = vmatpush2.msra.mxu0 %v1607
    %1795 = vmatprep.subr.mxu0 %v1604
    %1796 = vmatpush2.msra.mxu0 %v1603
    %1797 = vmatprep.subr.mxu0 %v1600
    %1798 = vmatpush2.msra.mxu0 %v1599
    %1799 = vmatprep.subr.mxu0 %v1596
    %1800 = vmatpush2.msra.mxu0 %v1595
    %1801 = vmatprep.subr.mxu0 %v1592
    %1802 = vmatpush2.msra.mxu0 %v1591
    %1803 = vmatprep.subr.mxu0 %v1588
    %1804 = vmatpush2.msra.mxu0 %v1587
    %1805 = vmatprep.subr.mxu0 %v1584
    %1806 = vmatpush2.msra.mxu0 %v1583
    %1807 = vmatprep.subr.mxu0 %v1580
    %1808 = vmatpush2.msra.mxu0 %v1579
    %1809 = vmatprep.subr.mxu0 %v1576
    %1810 = vmatpush2.msra.mxu0 %v1575
    %1811 = vmatprep.subr.mxu0 %v1572
    %1812 = vmatpush2.msra.mxu0 %v1571
    %1813 = vmatprep.subr.mxu0 %v1568
    %1814 = vmatpush2.msra.mxu0 %v1567
    %1815 = vmatprep.subr.mxu0 %v1564
    %1816 = vmatpush2.msra.mxu0 %v1563
    %1817 = vmatprep.subr.mxu0 %v1560
    %1818 = vmatpush2.msra.mxu0 %v1559
    %1819 = vmatprep.subr.mxu0 %v1556
    %1820 = vmatpush2.msra.mxu0 %v1555
    %1821 = vmatprep.subr.mxu0 %v1552
    %1822 = vmatpush2.msra.mxu0 %v1551
    %1823 = vmatprep.subr.mxu0 %v1548
    %1824 = vmatpush2.msra.mxu0 %v1547
    %1825 = vmatprep.mubr.f32.mxu0 %v1476
    %1826 = vmatmul.mubr.f32.gmra.mxu0 %v1475
    %v1827 = vpop.f32.mrf.mxu0
    %v1828 = vadd.f32 %v1744, %v1827
    %v1829 = vpop.f32.mrf.mxu0
    %v1830 = vadd.f32 %v1748, %v1829
    %1831 = vmatprep.mubr.f32.mxu0 %v1480
    %1832 = vmatmul.mubr.f32.gmra.mxu0 %v1479
    %v1833 = vpop.f32.mrf.mxu0
    %v1834 = vadd.f32 %v1744, %v1833
    %v1835 = vpop.f32.mrf.mxu0
    %v1836 = vadd.f32 %v1748, %v1835
    %1837 = vdwg.mxu0
    %1838 = vmatprep.subr.mxu0 %v1672
    %1839 = vmatpush1.msra.mxu0 %v1671
    %1840 = vmatprep.subr.mxu0 %v1668
    %1841 = vmatpush1.msra.mxu0 %v1667
    %1842 = vmatprep.subr.mxu0 %v1664
    %1843 = vmatpush1.msra.mxu0 %v1663
    %1844 = vmatprep.subr.mxu0 %v1660
    %1845 = vmatpush1.msra.mxu0 %v1659
    %1846 = vmatprep.subr.mxu0 %v1656
    %1847 = vmatpush1.msra.mxu0 %v1655
    %1848 = vmatprep.subr.mxu0 %v1652
    %1849 = vmatpush1.msra.mxu0 %v1651
    %1850 = vmatprep.subr.mxu0 %v1648
    %1851 = vmatpush1.msra.mxu0 %v1647
    %1852 = vmatprep.subr.mxu0 %v1644
    %1853 = vmatpush1.msra.mxu0 %v1643
    %1854 = vmatprep.subr.mxu0 %v1640
    %1855 = vmatpush1.msra.mxu0 %v1639
    %1856 = vmatprep.subr.mxu0 %v1636
    %1857 = vmatpush1.msra.mxu0 %v1635
    %1858 = vmatprep.subr.mxu0 %v1632
    %1859 = vmatpush1.msra.mxu0 %v1631
    %1860 = vmatprep.subr.mxu0 %v1628
    %1861 = vmatpush1.msra.mxu0 %v1627
    %1862 = vmatprep.subr.mxu0 %v1624
    %1863 = vmatpush1.msra.mxu0 %v1623
    %1864 = vmatprep.subr.mxu0 %v1620
    %1865 = vmatpush1.msra.mxu0 %v1619
    %1866 = vmatprep.subr.mxu0 %v1616
    %1867 = vmatpush1.msra.mxu0 %v1615
    %1868 = vmatprep.subr.mxu0 %v1612
    %1869 = vmatpush1.msra.mxu0 %v1611
    %1870 = vmatprep.subr.mxu0 %v1736
    %1871 = vmatpush2.msra.mxu0 %v1735
    %1872 = vmatprep.subr.mxu0 %v1732
    %1873 = vmatpush2.msra.mxu0 %v1731
    %1874 = vmatprep.subr.mxu0 %v1728
    %1875 = vmatpush2.msra.mxu0 %v1727
    %1876 = vmatprep.subr.mxu0 %v1724
    %1877 = vmatpush2.msra.mxu0 %v1723
    %1878 = vmatprep.subr.mxu0 %v1720
    %1879 = vmatpush2.msra.mxu0 %v1719
    %1880 = vmatprep.subr.mxu0 %v1716
    %1881 = vmatpush2.msra.mxu0 %v1715
    %1882 = vmatprep.subr.mxu0 %v1712
    %1883 = vmatpush2.msra.mxu0 %v1711
    %1884 = vmatprep.subr.mxu0 %v1708
    %1885 = vmatpush2.msra.mxu0 %v1707
    %1886 = vmatprep.subr.mxu0 %v1704
    %1887 = vmatpush2.msra.mxu0 %v1703
    %1888 = vmatprep.subr.mxu0 %v1700
    %1889 = vmatpush2.msra.mxu0 %v1699
    %1890 = vmatprep.subr.mxu0 %v1696
    %1891 = vmatpush2.msra.mxu0 %v1695
    %1892 = vmatprep.subr.mxu0 %v1692
    %1893 = vmatpush2.msra.mxu0 %v1691
    %1894 = vmatprep.subr.mxu0 %v1688
    %1895 = vmatpush2.msra.mxu0 %v1687
    %1896 = vmatprep.subr.mxu0 %v1684
    %1897 = vmatpush2.msra.mxu0 %v1683
    %1898 = vmatprep.subr.mxu0 %v1680
    %1899 = vmatpush2.msra.mxu0 %v1679
    %1900 = vmatprep.subr.mxu0 %v1676
    %1901 = vmatpush2.msra.mxu0 %v1675
    %1902 = vmatprep.mubr.f32.mxu0 %v1478
    %1903 = vmatmul.mubr.f32.gmra.mxu0 %v1477
    %v1904 = vpop.f32.mrf.mxu0
    %v1905 = vadd.f32 %v1828, %v1904
    %v1906 = vpop.f32.mrf.mxu0
    %v1907 = vadd.f32 %v1830, %v1906
    %1908 = vmatprep.mubr.f32.mxu0 %v1482
    %1909 = vmatmul.mubr.f32.gmra.mxu0 %v1481
    %v1910 = vpop.f32.mrf.mxu0
    %v1911 = vadd.f32 %v1834, %v1910
    %v1912 = vpop.f32.mrf.mxu0
    %v1913 = vadd.f32 %v1836, %v1912
    %1914 = vdwg.mxu0
    %1915 = vmatprep.subr.mxu0 %v1546
    %1916 = vmatpush1.msra.mxu0 %v1545
    %1917 = vmatprep.subr.mxu0 %v1542
    %1918 = vmatpush1.msra.mxu0 %v1541
    %1919 = vmatprep.subr.mxu0 %v1538
    %1920 = vmatpush1.msra.mxu0 %v1537
    %1921 = vmatprep.subr.mxu0 %v1534
    %1922 = vmatpush1.msra.mxu0 %v1533
    %1923 = vmatprep.subr.mxu0 %v1530
    %1924 = vmatpush1.msra.mxu0 %v1529
    %1925 = vmatprep.subr.mxu0 %v1526
    %1926 = vmatpush1.msra.mxu0 %v1525
    %1927 = vmatprep.subr.mxu0 %v1522
    %1928 = vmatpush1.msra.mxu0 %v1521
    %1929 = vmatprep.subr.mxu0 %v1518
    %1930 = vmatpush1.msra.mxu0 %v1517
    %1931 = vmatprep.subr.mxu0 %v1514
    %1932 = vmatpush1.msra.mxu0 %v1513
    %1933 = vmatprep.subr.mxu0 %v1510
    %1934 = vmatpush1.msra.mxu0 %v1509
    %1935 = vmatprep.subr.mxu0 %v1506
    %1936 = vmatpush1.msra.mxu0 %v1505
    %1937 = vmatprep.subr.mxu0 %v1502
    %1938 = vmatpush1.msra.mxu0 %v1501
    %1939 = vmatprep.subr.mxu0 %v1498
    %1940 = vmatpush1.msra.mxu0 %v1497
    %1941 = vmatprep.subr.mxu0 %v1494
    %1942 = vmatpush1.msra.mxu0 %v1493
    %1943 = vmatprep.subr.mxu0 %v1490
    %1944 = vmatpush1.msra.mxu0 %v1489
    %1945 = vmatprep.subr.mxu0 %v1486
    %1946 = vmatpush1.msra.mxu0 %v1485
    %1947 = vmatprep.subr.mxu0 %v1610
    %1948 = vmatpush2.msra.mxu0 %v1609
    %1949 = vmatprep.subr.mxu0 %v1606
    %1950 = vmatpush2.msra.mxu0 %v1605
    %1951 = vmatprep.subr.mxu0 %v1602
    %1952 = vmatpush2.msra.mxu0 %v1601
    %1953 = vmatprep.subr.mxu0 %v1598
    %1954 = vmatpush2.msra.mxu0 %v1597
    %1955 = vmatprep.subr.mxu0 %v1594
    %1956 = vmatpush2.msra.mxu0 %v1593
    %1957 = vmatprep.subr.mxu0 %v1590
    %1958 = vmatpush2.msra.mxu0 %v1589
    %1959 = vmatprep.subr.mxu0 %v1586
    %1960 = vmatpush2.msra.mxu0 %v1585
    %1961 = vmatprep.subr.mxu0 %v1582
    %1962 = vmatpush2.msra.mxu0 %v1581
    %1963 = vmatprep.subr.mxu0 %v1578
    %1964 = vmatpush2.msra.mxu0 %v1577
    %1965 = vmatprep.subr.mxu0 %v1574
    %1966 = vmatpush2.msra.mxu0 %v1573
    %1967 = vmatprep.subr.mxu0 %v1570
    %1968 = vmatpush2.msra.mxu0 %v1569
    %1969 = vmatprep.subr.mxu0 %v1566
    %1970 = vmatpush2.msra.mxu0 %v1565
    %1971 = vmatprep.subr.mxu0 %v1562
    %1972 = vmatpush2.msra.mxu0 %v1561
    %1973 = vmatprep.subr.mxu0 %v1558
    %1974 = vmatpush2.msra.mxu0 %v1557
    %1975 = vmatprep.subr.mxu0 %v1554
    %1976 = vmatpush2.msra.mxu0 %v1553
    %1977 = vmatprep.subr.mxu0 %v1550
    %1978 = vmatpush2.msra.mxu0 %v1549
    %1979 = vmatprep.mubr.f32.mxu0 %v1476
    %1980 = vmatmul.mubr.f32.gmra.mxu0 %v1475
    %v1981 = vpop.f32.mrf.mxu0
    %v1982 = vadd.f32 %v1752, %v1981
    %v1983 = vpop.f32.mrf.mxu0
    %v1984 = vadd.f32 %v1756, %v1983
    %1985 = vmatprep.mubr.f32.mxu0 %v1480
    %1986 = vmatmul.mubr.f32.gmra.mxu0 %v1479
    %v1987 = vpop.f32.mrf.mxu0
    %v1988 = vadd.f32 %v1752, %v1987
    %v1989 = vpop.f32.mrf.mxu0
    %v1990 = vadd.f32 %v1756, %v1989
    %1991 = vdwg.mxu0
    %1992 = vmatprep.subr.mxu0 %v1674
    %1993 = vmatpush1.msra.mxu0 %v1673
    %1994 = vmatprep.subr.mxu0 %v1670
    %1995 = vmatpush1.msra.mxu0 %v1669
    %1996 = vmatprep.subr.mxu0 %v1666
    %1997 = vmatpush1.msra.mxu0 %v1665
    %1998 = vmatprep.subr.mxu0 %v1662
    %1999 = vmatpush1.msra.mxu0 %v1661
    %2000 = vmatprep.subr.mxu0 %v1658
    %2001 = vmatpush1.msra.mxu0 %v1657
    %2002 = vmatprep.subr.mxu0 %v1654
    %2003 = vmatpush1.msra.mxu0 %v1653
    %2004 = vmatprep.subr.mxu0 %v1650
    %2005 = vmatpush1.msra.mxu0 %v1649
    %2006 = vmatprep.subr.mxu0 %v1646
    %2007 = vmatpush1.msra.mxu0 %v1645
    %2008 = vmatprep.subr.mxu0 %v1642
    %2009 = vmatpush1.msra.mxu0 %v1641
    %2010 = vmatprep.subr.mxu0 %v1638
    %2011 = vmatpush1.msra.mxu0 %v1637
    %2012 = vmatprep.subr.mxu0 %v1634
    %2013 = vmatpush1.msra.mxu0 %v1633
    %2014 = vmatprep.subr.mxu0 %v1630
    %2015 = vmatpush1.msra.mxu0 %v1629
    %2016 = vmatprep.subr.mxu0 %v1626
    %2017 = vmatpush1.msra.mxu0 %v1625
    %2018 = vmatprep.subr.mxu0 %v1622
    %2019 = vmatpush1.msra.mxu0 %v1621
    %2020 = vmatprep.subr.mxu0 %v1618
    %2021 = vmatpush1.msra.mxu0 %v1617
    %2022 = vmatprep.subr.mxu0 %v1614
    %2023 = vmatpush1.msra.mxu0 %v1613
    %2024 = vmatprep.subr.mxu0 %v1738
    %2025 = vmatpush2.msra.mxu0 %v1737
    %2026 = vmatprep.subr.mxu0 %v1734
    %2027 = vmatpush2.msra.mxu0 %v1733
    %2028 = vmatprep.subr.mxu0 %v1730
    %2029 = vmatpush2.msra.mxu0 %v1729
    %2030 = vmatprep.subr.mxu0 %v1726
    %2031 = vmatpush2.msra.mxu0 %v1725
    %2032 = vmatprep.subr.mxu0 %v1722
    %2033 = vmatpush2.msra.mxu0 %v1721
    %2034 = vmatprep.subr.mxu0 %v1718
    %2035 = vmatpush2.msra.mxu0 %v1717
    %2036 = vmatprep.subr.mxu0 %v1714
    %2037 = vmatpush2.msra.mxu0 %v1713
    %2038 = vmatprep.subr.mxu0 %v1710
    %2039 = vmatpush2.msra.mxu0 %v1709
    %2040 = vmatprep.subr.mxu0 %v1706
    %2041 = vmatpush2.msra.mxu0 %v1705
    %2042 = vmatprep.subr.mxu0 %v1702
    %2043 = vmatpush2.msra.mxu0 %v1701
    %2044 = vmatprep.subr.mxu0 %v1698
    %2045 = vmatpush2.msra.mxu0 %v1697
    %2046 = vmatprep.subr.mxu0 %v1694
    %2047 = vmatpush2.msra.mxu0 %v1693
    %2048 = vmatprep.subr.mxu0 %v1690
    %2049 = vmatpush2.msra.mxu0 %v1689
    %2050 = vmatprep.subr.mxu0 %v1686
    %2051 = vmatpush2.msra.mxu0 %v1685
    %2052 = vmatprep.subr.mxu0 %v1682
    %2053 = vmatpush2.msra.mxu0 %v1681
    %2054 = vmatprep.subr.mxu0 %v1678
    %2055 = vmatpush2.msra.mxu0 %v1677
    %2056 = vmatprep.mubr.f32.mxu0 %v1478
    %2057 = vmatmul.mubr.f32.gmra.mxu0 %v1477
    %v2058 = vpop.f32.mrf.mxu0
    %v2059 = vadd.f32 %v1982, %v2058
    %v2060 = vpop.f32.mrf.mxu0
    %v2061 = vadd.f32 %v1984, %v2060
    %2062 = vmatprep.mubr.f32.mxu0 %v1482
    %2063 = vmatmul.mubr.f32.gmra.mxu0 %v1481
    %v2064 = vpop.f32.mrf.mxu0
    %v2065 = vadd.f32 %v1988, %v2064
    %v2066 = vpop.f32.mrf.mxu0
    %v2067 = vadd.f32 %v1990, %v2066
    %2068 = vdwg.mxu0
    %v2069 = vmax.f32 %v1905, 0.0
    %v2070 = vmax.f32 %v1907, 0.0
    %v2071 = vmax.f32 %v2059, 0.0
    %v2072 = vmax.f32 %v2061, 0.0
    %v2073 = vmax.f32 %v1911, 0.0
    %v2074 = vmax.f32 %v1913, 0.0
    %v2075 = vmax.f32 %v2065, 0.0
    %v2076 = vmax.f32 %v2067, 0.0
    %v2077 = vld [vmem:[#allocation13] sm:$0xf]
    %v2079 = vlaneseq
    %v2080 = vshrl.u32 %v2079, 7
    %v2081 = vsub.s32 0, %v2080
    %v2082 = vrot.slane %v2077, %v2081
    %v2083 = vlaneseq
    %v2084 = vshrl.u32 %v2083, 7
    %v2085 = vsub.s32 1, %v2084
    %v2086 = vrot.slane %v2077, %v2085
    %v2087 = vlaneseq
    %v2088 = vshrl.u32 %v2087, 7
    %v2089 = vsub.s32 2, %v2088
    %v2090 = vrot.slane %v2077, %v2089
    %v2091 = vlaneseq
    %v2092 = vshrl.u32 %v2091, 7
    %v2093 = vsub.s32 3, %v2092
    %v2094 = vrot.slane %v2077, %v2093
    %v2099 = vmul.f32 %v2069, %v2082
    %v2100 = vmul.f32 %v2070, %v2086
    %v2101 = vmul.f32 %v2071, %v2090
    %v2102 = vmul.f32 %v2072, %v2094
    %v2103 = vmul.f32 %v2073, %v2082
    %v2104 = vmul.f32 %v2074, %v2086
    %v2105 = vmul.f32 %v2075, %v2090
    %v2106 = vmul.f32 %v2076, %v2094
    %v2107 = vadd.f32 %v2099, %v2100
    %v2108 = vadd.f32 %v2107, %v2101
    %v2109 = vadd.f32 %v2108, %v2102
    %2110 = vadd.xlane.f32.xlu0 %v2109
    %v2111 = vpop.xlane.xlu0 %2110
    %v2112 = vadd.f32 %v2103, %v2104
    %v2113 = vadd.f32 %v2112, %v2105
    %v2114 = vadd.f32 %v2113, %v2106
    %2115 = vadd.xlane.f32.xlu0 %v2114
    %v2116 = vpop.xlane.xlu0 %2115
    %v2117 = vld [vmem:[#allocation2] sm:$0x1]
    %v2119 = vlaneseq
    %v2120 = vshrl.u32 %v2119, 7
    %v2121 = vsub.s32 0, %v2120
    %v2122 = vrot.slane %v2117, %v2121
    %v2124 = vadd.f32 %v2111, %v2122
    %v2125 = vadd.f32 %v2116, %v2122
    %vm2126 = vcmp.gt.f32.partialorder %v2124, 20.0
    %vm2127 = vcmp.gt.f32.partialorder %v2125, 20.0
    %v2128 = vmin.f32 %v2124, 20.0
    %v2129 = vmin.f32 %v2125, 20.0
    %v2130 = vmul.f32 %v2128, 1.442695
    %v2131 = vpow.pop %v2130
    %v2132 = vmul.f32 %v2129, 1.442695
    %v2133 = vpow.pop %v2132
    %v2134 = vadd.f32 %v2131, 1.0
    %v2135 = vlog2.pop %v2134
    %v2136 = vmul.f32 %v2135, 0.6931472
    %v2137 = vmul.f32 -0.5, %v2131
    %v2138 = vadd.f32 %v2137, 1.0
    %v2139 = vmul.f32 %v2138, %v2131
    %v2140 = vand.u32 2147483647, %v2131
    %vm2141 = vcmp.lt.f32.partialorder %v2140, 0.0004427343
    %v2142 = vsel %vm2141, %v2139, %v2136
    %v2143 = vadd.f32 %v2133, 1.0
    %v2144 = vlog2.pop %v2143
    %v2145 = vmul.f32 %v2144, 0.6931472
    %v2146 = vmul.f32 -0.5, %v2133
    %v2147 = vadd.f32 %v2146, 1.0
    %v2148 = vmul.f32 %v2147, %v2133
    %v2149 = vand.u32 2147483647, %v2133
    %vm2150 = vcmp.lt.f32.partialorder %v2149, 0.0004427343
    %v2151 = vsel %vm2150, %v2148, %v2145
    %v2152 = vsel %vm2126, %v2124, %v2142
    %v2153 = vsel %vm2127, %v2125, %v2151
    %vm2154 = vcmask 7168
    %2155 = vst.msk [vmem:[%s9] sm:$0xff] %vm2154, %v2152
    %2156 = vst.msk [vmem:[%s9 + $0x8] sm:$0xff] %vm2154, %v2153
    // Predicated region
    $region66: #{tpu_custom_call.1} parent=1 // pred_check
      _
    $region67: #{tpu_custom_call.1} parent=1 // pred_check_branch
      %2158 = sbr.rel (0) target = $region69
    $region68: #{tpu_custom_call.1} parent=1 // pred_region
      _
    $region69: #{tpu_custom_call.1} parent=1 // pred_fallthru
      _
    // Predicated region
    $region70: #{tpu_custom_call.1} parent=1 // pred_check
      _
    $region71: #{tpu_custom_call.1} parent=1 // pred_check_branch
      %2160 = sbr.rel (0) target = $region73
    $region72: #{tpu_custom_call.1} parent=1 // pred_region
      _
    $region73: #{tpu_custom_call.1} parent=1 // pred_fallthru
      _
    %2161 = vsyncpa [#allocation4], 1
    %2162 = vsyncpa [#allocation6], 1
    %2163 = vsyncpa [#allocation9], 1
    %2164 = vsyncpa [#allocation12], 1

</llo_original>
